<compile_context>
chip_gen: v5e
topology: v5e:2x2
jax: 0.10.0
libtpu: 0.0.40
codegen_flags: <defaults>
</compile_context>

<pallas_src>
import functools

import jax
import jax.numpy as jnp
from jax import lax
from jax.experimental import pallas as pl
from jax.experimental.pallas import tpu as pltpu


def _round_up(n, m):
    return ((n + m - 1) // m) * m


# --------------------------------------------------------------------------- #
# Kernel
# --------------------------------------------------------------------------- #
def fasttext_kernel(tok_ref, m1_ref, b1_ref, w2_ref, b2_ref, out_ref,
                    counts_ref, *, matmul_dtype, counts_dtype):
    """One (batch-tile, seq-tile) grid step.

    tok_ref:    (TB, TS, 1) int32          tokens (sentinel -1 = padding)
    m1_ref:     (Vp, Hp)    matmul_dtype   fused (embed_table @ w1) / S
    b1_ref:     (1, Hp)     f32
    w2_ref:     (Hp, Cp)    matmul_dtype
    b2_ref:     (1, Cp)     f32
    out_ref:    (TB, Cp)    f32            logits (lane-dense store)
    counts_ref: (TB, Vp)    counts_dtype   VMEM scratch: bag-of-words counts
    """
    sj = pl.program_id(1)

    @pl.when(sj == 0)
    def _init():
        counts_ref[...] = jnp.zeros_like(counts_ref)

    # Fused embedding-gather + mean, expressed as bag-of-words counts.  The
    # vocab iota lives in a single (1, 1, Vp) row and broadcasts against the
    # (TB, TS, 1) tokens (tokens sit on the sublane axis, vocab on lanes).
    tok = tok_ref[...]                                           # (TB, TS, 1)
    vp = m1_ref.shape[0]
    vocab_ids = lax.broadcasted_iota(jnp.int32, (1, 1, vp), 2)   # (1, 1, Vp)
    onehot = (tok == vocab_ids).astype(counts_dtype)             # (TB, TS, Vp)
    counts_ref[...] += jnp.sum(onehot, axis=1)                   # (TB, Vp)

    # TODO(synk): dropout omitted (identity in inference/eval mode).

    @pl.when(sj == pl.num_programs(1) - 1)
    def _finalize():
        counts = counts_ref[...].astype(matmul_dtype)
        # fc1 (mean + fc1 fused into M1), f32 accumulation / bias add.
        h = jnp.dot(counts, m1_ref[...],
                    preferred_element_type=jnp.float32) + b1_ref[...]
        h = jnp.maximum(h, 0.0)                                   # relu (VPU)
        out = jnp.dot(h.astype(matmul_dtype), w2_ref[...],
                      preferred_element_type=jnp.float32) + b2_ref[...]  # fc2
        out_ref[...] = out.astype(out_ref.dtype)                  # lane-dense


# --------------------------------------------------------------------------- #
# One-time parameter preparation (do NOT call per forward step)
# --------------------------------------------------------------------------- #
def prepare_fasttext_params(embed_table, w1, b1, w2, b2, *, seq_len,
                            matmul_dtype=jnp.bfloat16):
    """Eval-mode fusion + lane padding + dtype cast, done once per model.

    Valid because dropout is identity in eval and mean -> fc1 is linear:
      mean(E[tokens]) @ w1 == counts @ ((E @ w1) / S).
    The fold happens in f32 and is cast once to `matmul_dtype` (no double
    rounding).
    """
    V, D = embed_table.shape
    H = w1.shape[1]
    C = w2.shape[1]
    mdt = jnp.dtype(matmul_dtype)

    Vp = _round_up(V, 128)
    Hp = _round_up(H, 128)
    Cp = _round_up(C, 128)

    m1 = (embed_table.astype(jnp.float32) @ w1.astype(jnp.float32)) / float(seq_len)

    m1_p = jnp.zeros((Vp, Hp), mdt).at[:V, :H].set(m1.astype(mdt))
    w2_p = jnp.zeros((Hp, Cp), mdt).at[:H, :C].set(w2.astype(mdt))
    b1_p = jnp.zeros((1, Hp), jnp.float32).at[0, :H].set(b1.astype(jnp.float32))
    b2_p = jnp.zeros((1, Cp), jnp.float32).at[0, :C].set(b2.astype(jnp.float32))

    return dict(m1=m1_p, b1=b1_p, w2=w2_p, b2=b2_p,
                seq_len=int(seq_len), num_classes=int(C),
                vocab_padded=int(Vp), hidden_padded=int(Hp),
                classes_padded=int(Cp), matmul_dtype=mdt)


# --------------------------------------------------------------------------- #
# Tile selection: biggest batch tile that fits the VMEM budget
# --------------------------------------------------------------------------- #
def _choose_tiles(B, S, Vp, Cp, weight_bytes, onehot_itemsize, counts_itemsize,
                  max_block_b, max_block_s, vmem_budget):
    TB = min(_round_up(max_block_b, 8), _round_up(B, 8))
    TS = min(_round_up(max_block_s, 8), _round_up(S, 8))

    def est(tb, ts):
        tok_buf = 2 * tb * ts * 128 * 4          # (TB,TS,1) int32 lane-padded, dbl-buf
        out_buf = 2 * tb * Cp * 4                # f32 logits, dbl-buf
        counts = tb * Vp * counts_itemsize       # scratch accumulator
        onehot = tb * ts * Vp * onehot_itemsize  # compare / sum working set
        return weight_bytes + tok_buf + out_buf + counts + onehot

    while est(TB, TS) > vmem_budget and (TB > 8 or TS > 8):
        if TB >= TS and TB > 8:
            TB = max(8, _round_up(TB // 2, 8))
        else:
            TS = max(8, _round_up(TS // 2, 8))
    return TB, TS, est(TB, TS)


# --------------------------------------------------------------------------- #
# pallas_call builder + forward
# --------------------------------------------------------------------------- #
def _make_pallas_call(TB, TS, Vp, Hp, Cp, Bp, Sp, mdt, counts_dtype,
                      batch_sem, vmem_limit, cost, single_buffer_weights):
    resident_kwargs = {}
    if single_buffer_weights and hasattr(pl, "Buffered"):
        # Constant-index (VMEM-resident) operands do not need double buffering;
        # single-buffering roughly halves their VMEM footprint.
        resident_kwargs = dict(pipeline_mode=pl.Buffered(1))

    kernel = functools.partial(fasttext_kernel, matmul_dtype=mdt,
                               counts_dtype=counts_dtype)
    return pl.pallas_call(
        kernel,
        out_shape=jax.ShapeDtypeStruct((Bp, Cp), jnp.float32),
        grid=(Bp // TB, Sp // TS),
        in_specs=[
            # Tokens: streamed per (batch, seq) tile, pipelined by Pallas.
            pl.BlockSpec((TB, TS, 1), lambda i, j: (i, j, 0)),
            # Fused table@w1, fc2 weights, biases: constant index => resident.
            pl.BlockSpec((Vp, Hp), lambda i, j: (0, 0), **resident_kwargs),
            pl.BlockSpec((1, Hp), lambda i, j: (0, 0), **resident_kwargs),
            pl.BlockSpec((Hp, Cp), lambda i, j: (0, 0), **resident_kwargs),
            pl.BlockSpec((1, Cp), lambda i, j: (0, 0), **resident_kwargs),
        ],
        out_specs=pl.BlockSpec((TB, Cp), lambda i, j: (i, 0)),
        scratch_shapes=[pltpu.VMEM((TB, Vp), counts_dtype)],
        compiler_params=pltpu.CompilerParams(
            dimension_semantics=(batch_sem, "arbitrary"),
            vmem_limit_bytes=vmem_limit,
        ),
        cost_estimate=cost,
    )


def fasttext_forward(tokens, params, *, max_block_b=256, max_block_s=64,
                     vmem_budget_bytes=48 << 20):
    """tokens: (B, S) int token ids; returns logits (B, num_classes) f32."""
    B, S = tokens.shape
    assert S == params["seq_len"], "params were fused for a different seq_len (1/S fold)"

    mdt = params["matmul_dtype"]
    Vp = params["vocab_padded"]
    Hp = params["hidden_padded"]
    Cp = params["classes_padded"]
    C = params["num_classes"]

    # One-hot / counts in bf16 only when exact (integer counts <= 256).
    counts_dtype = mdt if (mdt == jnp.bfloat16 and S <= 256) else jnp.float32

    weight_bytes = (Vp * Hp + Hp * Cp) * mdt.itemsize + (Hp + Cp) * 4
    TB, TS, est_vmem = _choose_tiles(
        B, S, Vp, Cp, weight_bytes,
        onehot_itemsize=jnp.dtype(counts_dtype).itemsize,
        counts_itemsize=jnp.dtype(counts_dtype).itemsize,
        max_block_b=max_block_b, max_block_s=max_block_s,
        vmem_budget=vmem_budget_bytes)

    Bp = _round_up(B, TB)
    Sp = _round_up(S, TS)

    # Sentinel -1 for padded batch rows / seq positions: never matches any
    # vocab id => zero contribution to counts (and the 1/S fold uses true S).
    tok_p = jnp.full((Bp, Sp), -1, jnp.int32).at[:B, :S].set(tokens.astype(jnp.int32))
    tok3d = tok_p[:, :, None]                  # tokens on the sublane axis in-kernel

    # Small batch grids: keep the pipeline (and the single weight copy) on one
    # TensorCore; only shard the batch axis when there is real work per core.
    batch_sem = "parallel" if (Bp // TB) >= 4 else "arbitrary"

    vmem_limit = int(min(60 << 20, max(32 << 20, 2 * est_vmem)))

    flops = 2 * Bp * (Vp * Hp + Hp * Cp)
    bytes_accessed = Bp * Sp * 4 + weight_bytes + Bp * Cp * 4
    cost = pl.CostEstimate(flops=flops, transcendentals=0,
                           bytes_accessed=bytes_accessed)

    args = (tok3d, params["m1"], params["b1"], params["w2"], params["b2"])
    try:
        out = _make_pallas_call(TB, TS, Vp, Hp, Cp, Bp, Sp, mdt, counts_dtype,
                                batch_sem, vmem_limit, cost,
                                single_buffer_weights=True)(*args)
    except Exception:
        # Fallback for jax versions without BlockSpec pipeline_mode support:
        # default (double-buffered) resident weights.
        out = _make_pallas_call(TB, TS, Vp, Hp, Cp, Bp, Sp, mdt, counts_dtype,
                                batch_sem, vmem_limit, cost,
                                single_buffer_weights=False)(*args)

    # TODO(synk): for very large vocabularies, replace the VMEM-resident fused
    # table with an HBM table (memory_space=pl.ANY) + scalar-prefetch-driven
    # row-gather DMAs; the one-hot design scales with V and is VMEM-capped.
    return out[:B, :C]


# --------------------------------------------------------------------------- #
# Pure-JAX reference + demo
# --------------------------------------------------------------------------- #
def reference_forward(tokens, embed_table, w1, b1, w2, b2):
    emb = jnp.take(embed_table, tokens, axis=0)
    pooled = jnp.mean(emb, axis=1)
    h = jnp.maximum(pooled @ w1 + b1, 0.0)
    return h @ w2 + b2


if __name__ == "__main__":
    # Small, module-consistent shapes; tile caps chosen so the demo exercises a
    # 2 x 2 grid (2 batch tiles x 2 seq reduction steps) plus sentinel padding.
    vocab_size = 50
    dim_embed = 32
    hidden_size = 32
    num_classes = 4
    batch = 24
    seq = 24

    key = jax.random.PRNGKey(0)
    k_tok, k_emb, k_w1, k_b1, k_w2, k_b2 = jax.random.split(key, 6)

    tokens = jax.random.randint(k_tok, (batch, seq), 0, vocab_size, dtype=jnp.int32)
    embed_table = jax.random.normal(k_emb, (vocab_size, dim_embed), jnp.float32) * 0.1
    w1 = jax.random.normal(k_w1, (dim_embed, hidden_size), jnp.float32) * 0.1
    b1 = jax.random.normal(k_b1, (hidden_size,), jnp.float32) * 0.01
    w2 = jax.random.normal(k_w2, (hidden_size, num_classes), jnp.float32) * 0.1
    b2 = jax.random.normal(k_b2, (num_classes,), jnp.float32) * 0.01

    ref = reference_forward(tokens, embed_table, w1, b1, w2, b2)

    # f32 matmul path: matches the f32 reference tightly.
    params_f32 = prepare_fasttext_params(embed_table, w1, b1, w2, b2,
                                         seq_len=seq, matmul_dtype=jnp.float32)
    logits_f32 = fasttext_forward(tokens, params_f32,
                                  max_block_b=16, max_block_s=16)
    jax.block_until_ready(logits_f32)
    assert logits_f32.shape == (batch, num_classes)
    assert jnp.allclose(logits_f32, ref, atol=1e-5, rtol=1e-5), "f32 mismatch vs reference"

    # bf16-inputs / f32-accumulate path (default; MXU fast path on v5e/v6e/v7x).
    params_bf16 = prepare_fasttext_params(embed_table, w1, b1, w2, b2,
                                          seq_len=seq, matmul_dtype=jnp.bfloat16)
    logits_bf16 = fasttext_forward(tokens, params_bf16,
                                   max_block_b=16, max_block_s=16)
    jax.block_until_ready(logits_bf16)
    assert logits_bf16.shape == (batch, num_classes)
    assert jnp.allclose(logits_bf16, ref, atol=2e-2, rtol=2e-2), "bf16 mismatch vs reference"

    print("KERNEL_OK")
</pallas_src>

<mosaic_0001>
module attributes {stable_mosaic.version = 11 : i64} {
  func.func @fasttext_kernel(%arg0: i32, %arg1: i32, %arg2: memref<16x16x1xi32, #tpu.memory_space<vmem>>, %arg3: memref<128x128xf32, #tpu.memory_space<vmem>>, %arg4: memref<1x128xf32, #tpu.memory_space<vmem>>, %arg5: memref<128x128xf32, #tpu.memory_space<vmem>>, %arg6: memref<1x128xf32, #tpu.memory_space<vmem>>, %arg7: memref<16x128xf32, #tpu.memory_space<vmem>>, %arg8: memref<16x128xf32, #tpu.memory_space<vmem>>) attributes {dimension_semantics = [#tpu.dimension_semantics<arbitrary>, #tpu.dimension_semantics<arbitrary>], iteration_bounds = array<i64: 2, 2>, scalar_prefetch = 0 : i64, scratch_operands = 1 : i64, tpu.core_type = #tpu.core_type<tc>, window_params = [{transform_indices = @transform_0, window_bounds = array<i64: 16, 16, 1>}, {pipeline_mode = #tpu.pipeline_mode<synchronous>, transform_indices = @transform_1, window_bounds = array<i64: 128, 128>}, {pipeline_mode = #tpu.pipeline_mode<synchronous>, transform_indices = @transform_2, window_bounds = array<i64: 1, 128>}, {pipeline_mode = #tpu.pipeline_mode<synchronous>, transform_indices = @transform_3, window_bounds = array<i64: 128, 128>}, {pipeline_mode = #tpu.pipeline_mode<synchronous>, transform_indices = @transform_4, window_bounds = array<i64: 1, 128>}, {transform_indices = @transform_5, window_bounds = array<i64: 16, 128>}]} {
    %c0_i32 = arith.constant 0 : i32
    %0 = arith.cmpi eq, %arg1, %c0_i32 : i32
    %1 = arith.extui %0 : i1 to i32
    %c0_i32_0 = arith.constant 0 : i32
    %2 = arith.cmpi ne, %1, %c0_i32_0 : i32
    scf.if %2 {
      %cst_8 = arith.constant 0.000000e+00 : f32
      %17 = vector.broadcast %cst_8 : f32 to vector<16x128xf32>
      %c0_9 = arith.constant 0 : index
      %c0_10 = arith.constant 0 : index
      %18 = vector.load %arg8[%c0_9, %c0_10] : memref<16x128xf32, #tpu.memory_space<vmem>>, vector<16x128xf32>
      tpu.vector_store %arg8[%c0_9, %c0_10], %17 {strides = array<i32>} : memref<16x128xf32, #tpu.memory_space<vmem>>, vector<16x128xf32>,
    } else {
    }
    %c0 = arith.constant 0 : index
    %c0_1 = arith.constant 0 : index
    %c0_2 = arith.constant 0 : index
    %3 = vector.load %arg2[%c0, %c0_1, %c0_2] : memref<16x16x1xi32, #tpu.memory_space<vmem>>, vector<16x16x1xi32>
    %4 = tpu.iota {dimensions = array<i32: 2>} : vector<1x1x128xi32>
    %5 = vector.broadcast %3 : vector<16x16x1xi32> to vector<16x16x128xi32>
    %6 = vector.broadcast %4 : vector<1x1x128xi32> to vector<16x16x128xi32>
    %7 = arith.cmpi eq, %5, %6 : vector<16x16x128xi32>
    %8 = arith.extui %7 : vector<16x16x128xi1> to vector<16x16x128xi32>
    %9 = arith.sitofp %8 : vector<16x16x128xi32> to vector<16x16x128xf32>
    %c0_3 = arith.constant 0 : index
    %c0_4 = arith.constant 0 : index
    %10 = vector.load %arg8[%c0_3, %c0_4] : memref<16x128xf32, #tpu.memory_space<vmem>>, vector<16x128xf32>
    %cst = arith.constant dense<0.000000e+00> : vector<16x128xf32>
    %11 = vector.multi_reduction <add>, %9, %cst [1] : vector<16x16x128xf32> to vector<16x128xf32>
    %12 = arith.addf %10, %11 : vector<16x128xf32>
    %c0_5 = arith.constant 0 : index
    %c0_6 = arith.constant 0 : index
    %13 = vector.load %arg8[%c0_5, %c0_6] : memref<16x128xf32, #tpu.memory_space<vmem>>, vector<16x128xf32>
    tpu.vector_store %arg8[%c0_5, %c0_6], %12 {strides = array<i32>} : memref<16x128xf32, #tpu.memory_space<vmem>>, vector<16x128xf32>,
    %c1_i32 = arith.constant 1 : i32
    %14 = arith.cmpi eq, %arg1, %c1_i32 : i32
    %15 = arith.extui %14 : i1 to i32
    %c0_i32_7 = arith.constant 0 : i32
    %16 = arith.cmpi ne, %15, %c0_i32_7 : i32
    scf.if %16 {
      %c0_8 = arith.constant 0 : index
      %c0_9 = arith.constant 0 : index
      %17 = vector.load %arg8[%c0_8, %c0_9] : memref<16x128xf32, #tpu.memory_space<vmem>>, vector<16x128xf32>
      %c0_10 = arith.constant 0 : index
      %c0_11 = arith.constant 0 : index
      %18 = vector.load %arg3[%c0_10, %c0_11] : memref<128x128xf32, #tpu.memory_space<vmem>>, vector<128x128xf32>
      %cst_12 = arith.constant dense<0.000000e+00> : vector<16x128xf32>
      %19 = tpu.matmul %17, %18, %cst_12 {dimension_numbers = #tpu.dot_dimension_numbers<[1], [0], [0], [1], [0, 0, 1, 1], [], []>} : vector<16x128xf32>, vector<128x128xf32>, vector<16x128xf32> -> vector<16x128xf32>
      %c0_13 = arith.constant 0 : index
      %c0_14 = arith.constant 0 : index
      %20 = vector.load %arg4[%c0_13, %c0_14] : memref<1x128xf32, #tpu.memory_space<vmem>>, vector<1x128xf32>
      %21 = vector.broadcast %20 : vector<1x128xf32> to vector<16x128xf32>
      %22 = arith.addf %19, %21 : vector<16x128xf32>
      %cst_15 = arith.constant 0.000000e+00 : f32
      %23 = vector.broadcast %cst_15 : f32 to vector<16x128xf32>
      %24 = arith.maximumf %22, %23 : vector<16x128xf32>
      %c0_16 = arith.constant 0 : index
      %c0_17 = arith.constant 0 : index
      %25 = vector.load %arg5[%c0_16, %c0_17] : memref<128x128xf32, #tpu.memory_space<vmem>>, vector<128x128xf32>
      %cst_18 = arith.constant dense<0.000000e+00> : vector<16x128xf32>
      %26 = tpu.matmul %24, %25, %cst_18 {dimension_numbers = #tpu.dot_dimension_numbers<[1], [0], [0], [1], [0, 0, 1, 1], [], []>} : vector<16x128xf32>, vector<128x128xf32>, vector<16x128xf32> -> vector<16x128xf32>
      %c0_19 = arith.constant 0 : index
      %c0_20 = arith.constant 0 : index
      %27 = vector.load %arg6[%c0_19, %c0_20] : memref<1x128xf32, #tpu.memory_space<vmem>>, vector<1x128xf32>
      %28 = vector.broadcast %27 : vector<1x128xf32> to vector<16x128xf32>
      %29 = arith.addf %26, %28 : vector<16x128xf32>
      %c0_21 = arith.constant 0 : index
      %c0_22 = arith.constant 0 : index
      %30 = vector.load %arg7[%c0_21, %c0_22] : memref<16x128xf32, #tpu.memory_space<vmem>>, vector<16x128xf32>
      tpu.vector_store %arg7[%c0_21, %c0_22], %29 {strides = array<i32>} : memref<16x128xf32, #tpu.memory_space<vmem>>, vector<16x128xf32>,
    } else {
    }
    return
  }
  func.func @transform_0(%arg0: i32, %arg1: i32) -> (i32, i32, i32) {
    %c0_i32 = arith.constant 0 : i32
    %c0_i32_0 = arith.constant 0 : i32
    return %arg0, %arg1, %c0_i32 : i32, i32, i32
  }
  func.func @transform_1(%arg0: i32, %arg1: i32) -> (i32, i32) {
    %c0_i32 = arith.constant 0 : i32
    %c0_i32_0 = arith.constant 0 : i32
    %c0_i32_1 = arith.constant 0 : i32
    return %c0_i32, %c0_i32_0 : i32, i32
  }
  func.func @transform_2(%arg0: i32, %arg1: i32) -> (i32, i32) {
    %c0_i32 = arith.constant 0 : i32
    %c0_i32_0 = arith.constant 0 : i32
    %c0_i32_1 = arith.constant 0 : i32
    return %c0_i32, %c0_i32_0 : i32, i32
  }
  func.func @transform_3(%arg0: i32, %arg1: i32) -> (i32, i32) {
    %c0_i32 = arith.constant 0 : i32
    %c0_i32_0 = arith.constant 0 : i32
    %c0_i32_1 = arith.constant 0 : i32
    return %c0_i32, %c0_i32_0 : i32, i32
  }
  func.func @transform_4(%arg0: i32, %arg1: i32) -> (i32, i32) {
    %c0_i32 = arith.constant 0 : i32
    %c0_i32_0 = arith.constant 0 : i32
    %c0_i32_1 = arith.constant 0 : i32
    return %c0_i32, %c0_i32_0 : i32, i32
  }
  func.func @transform_5(%arg0: i32, %arg1: i32) -> (i32, i32) {
    %c0_i32 = arith.constant 0 : i32
    %c0_i32_0 = arith.constant 0 : i32
    return %arg0, %c0_i32 : i32, i32
  }
}

module attributes {stable_mosaic.version = 11 : i64} {
  func.func @fasttext_kernel(%arg0: i32, %arg1: i32, %arg2: memref<16x16x1xi32, #tpu.memory_space<vmem>>, %arg3: memref<128x128xf32, #tpu.memory_space<vmem>>, %arg4: memref<1x128xf32, #tpu.memory_space<vmem>>, %arg5: memref<128x128xf32, #tpu.memory_space<vmem>>, %arg6: memref<1x128xf32, #tpu.memory_space<vmem>>, %arg7: memref<16x128xf32, #tpu.memory_space<vmem>>, %arg8: memref<16x128xf32, #tpu.memory_space<vmem>>) attributes {dimension_semantics = [#tpu.dimension_semantics<arbitrary>, #tpu.dimension_semantics<arbitrary>], iteration_bounds = array<i64: 2, 2>, scalar_prefetch = 0 : i64, scratch_operands = 1 : i64, tpu.core_type = #tpu.core_type<tc>, window_params = [{transform_indices = @transform_0, window_bounds = array<i64: 16, 16, 1>}, {pipeline_mode = #tpu.pipeline_mode<synchronous>, transform_indices = @transform_1, window_bounds = array<i64: 128, 128>}, {pipeline_mode = #tpu.pipeline_mode<synchronous>, transform_indices = @transform_2, window_bounds = array<i64: 1, 128>}, {pipeline_mode = #tpu.pipeline_mode<synchronous>, transform_indices = @transform_3, window_bounds = array<i64: 128, 128>}, {pipeline_mode = #tpu.pipeline_mode<synchronous>, transform_indices = @transform_4, window_bounds = array<i64: 1, 128>}, {transform_indices = @transform_5, window_bounds = array<i64: 16, 128>}]} {
    %c0_i32 = arith.constant 0 : i32
    %0 = arith.cmpi eq, %arg1, %c0_i32 : i32
    %1 = arith.extui %0 : i1 to i32
    %c0_i32_0 = arith.constant 0 : i32
    %2 = arith.cmpi ne, %1, %c0_i32_0 : i32
    scf.if %2 {
      %cst_8 = arith.constant 0.000000e+00 : f32
      %17 = vector.broadcast %cst_8 : f32 to vector<16x128xf32>
      %c0_9 = arith.constant 0 : index
      %c0_10 = arith.constant 0 : index
      %18 = vector.load %arg8[%c0_9, %c0_10] : memref<16x128xf32, #tpu.memory_space<vmem>>, vector<16x128xf32>
      tpu.vector_store %arg8[%c0_9, %c0_10], %17 {strides = array<i32>} : memref<16x128xf32, #tpu.memory_space<vmem>>, vector<16x128xf32>,
    } else {
    }
    %c0 = arith.constant 0 : index
    %c0_1 = arith.constant 0 : index
    %c0_2 = arith.constant 0 : index
    %3 = vector.load %arg2[%c0, %c0_1, %c0_2] : memref<16x16x1xi32, #tpu.memory_space<vmem>>, vector<16x16x1xi32>
    %4 = tpu.iota {dimensions = array<i32: 2>} : vector<1x1x128xi32>
    %5 = vector.broadcast %3 : vector<16x16x1xi32> to vector<16x16x128xi32>
    %6 = vector.broadcast %4 : vector<1x1x128xi32> to vector<16x16x128xi32>
    %7 = arith.cmpi eq, %5, %6 : vector<16x16x128xi32>
    %8 = arith.extui %7 : vector<16x16x128xi1> to vector<16x16x128xi32>
    %9 = arith.sitofp %8 : vector<16x16x128xi32> to vector<16x16x128xf32>
    %c0_3 = arith.constant 0 : index
    %c0_4 = arith.constant 0 : index
    %10 = vector.load %arg8[%c0_3, %c0_4] : memref<16x128xf32, #tpu.memory_space<vmem>>, vector<16x128xf32>
    %cst = arith.constant dense<0.000000e+00> : vector<16x128xf32>
    %11 = vector.multi_reduction <add>, %9, %cst [1] : vector<16x16x128xf32> to vector<16x128xf32>
    %12 = arith.addf %10, %11 : vector<16x128xf32>
    %c0_5 = arith.constant 0 : index
    %c0_6 = arith.constant 0 : index
    %13 = vector.load %arg8[%c0_5, %c0_6] : memref<16x128xf32, #tpu.memory_space<vmem>>, vector<16x128xf32>
    tpu.vector_store %arg8[%c0_5, %c0_6], %12 {strides = array<i32>} : memref<16x128xf32, #tpu.memory_space<vmem>>, vector<16x128xf32>,
    %c1_i32 = arith.constant 1 : i32
    %14 = arith.cmpi eq, %arg1, %c1_i32 : i32
    %15 = arith.extui %14 : i1 to i32
    %c0_i32_7 = arith.constant 0 : i32
    %16 = arith.cmpi ne, %15, %c0_i32_7 : i32
    scf.if %16 {
      %c0_8 = arith.constant 0 : index
      %c0_9 = arith.constant 0 : index
      %17 = vector.load %arg8[%c0_8, %c0_9] : memref<16x128xf32, #tpu.memory_space<vmem>>, vector<16x128xf32>
      %c0_10 = arith.constant 0 : index
      %c0_11 = arith.constant 0 : index
      %18 = vector.load %arg3[%c0_10, %c0_11] : memref<128x128xf32, #tpu.memory_space<vmem>>, vector<128x128xf32>
      %cst_12 = arith.constant dense<0.000000e+00> : vector<16x128xf32>
      %19 = tpu.matmul %17, %18, %cst_12 {dimension_numbers = #tpu.dot_dimension_numbers<[1], [0], [0], [1], [0, 0, 1, 1], [], []>} : vector<16x128xf32>, vector<128x128xf32>, vector<16x128xf32> -> vector<16x128xf32>
      %c0_13 = arith.constant 0 : index
      %c0_14 = arith.constant 0 : index
      %20 = vector.load %arg4[%c0_13, %c0_14] : memref<1x128xf32, #tpu.memory_space<vmem>>, vector<1x128xf32>
      %21 = vector.broadcast %20 : vector<1x128xf32> to vector<16x128xf32>
      %22 = arith.addf %19, %21 : vector<16x128xf32>
      %cst_15 = arith.constant 0.000000e+00 : f32
      %23 = vector.broadcast %cst_15 : f32 to vector<16x128xf32>
      %24 = arith.maximumf %22, %23 : vector<16x128xf32>
      %c0_16 = arith.constant 0 : index
      %c0_17 = arith.constant 0 : index
      %25 = vector.load %arg5[%c0_16, %c0_17] : memref<128x128xf32, #tpu.memory_space<vmem>>, vector<128x128xf32>
      %cst_18 = arith.constant dense<0.000000e+00> : vector<16x128xf32>
      %26 = tpu.matmul %24, %25, %cst_18 {dimension_numbers = #tpu.dot_dimension_numbers<[1], [0], [0], [1], [0, 0, 1, 1], [], []>} : vector<16x128xf32>, vector<128x128xf32>, vector<16x128xf32> -> vector<16x128xf32>
      %c0_19 = arith.constant 0 : index
      %c0_20 = arith.constant 0 : index
      %27 = vector.load %arg6[%c0_19, %c0_20] : memref<1x128xf32, #tpu.memory_space<vmem>>, vector<1x128xf32>
      %28 = vector.broadcast %27 : vector<1x128xf32> to vector<16x128xf32>
      %29 = arith.addf %26, %28 : vector<16x128xf32>
      %c0_21 = arith.constant 0 : index
      %c0_22 = arith.constant 0 : index
      %30 = vector.load %arg7[%c0_21, %c0_22] : memref<16x128xf32, #tpu.memory_space<vmem>>, vector<16x128xf32>
      tpu.vector_store %arg7[%c0_21, %c0_22], %29 {strides = array<i32>} : memref<16x128xf32, #tpu.memory_space<vmem>>, vector<16x128xf32>,
    } else {
    }
    return
  }
  func.func @transform_0(%arg0: i32, %arg1: i32) -> (i32, i32, i32) {
    %c0_i32 = arith.constant 0 : i32
    %c0_i32_0 = arith.constant 0 : i32
    return %arg0, %arg1, %c0_i32 : i32, i32, i32
  }
  func.func @transform_1(%arg0: i32, %arg1: i32) -> (i32, i32) {
    %c0_i32 = arith.constant 0 : i32
    %c0_i32_0 = arith.constant 0 : i32
    %c0_i32_1 = arith.constant 0 : i32
    return %c0_i32, %c0_i32_0 : i32, i32
  }
  func.func @transform_2(%arg0: i32, %arg1: i32) -> (i32, i32) {
    %c0_i32 = arith.constant 0 : i32
    %c0_i32_0 = arith.constant 0 : i32
    %c0_i32_1 = arith.constant 0 : i32
    return %c0_i32, %c0_i32_0 : i32, i32
  }
  func.func @transform_3(%arg0: i32, %arg1: i32) -> (i32, i32) {
    %c0_i32 = arith.constant 0 : i32
    %c0_i32_0 = arith.constant 0 : i32
    %c0_i32_1 = arith.constant 0 : i32
    return %c0_i32, %c0_i32_0 : i32, i32
  }
  func.func @transform_4(%arg0: i32, %arg1: i32) -> (i32, i32) {
    %c0_i32 = arith.constant 0 : i32
    %c0_i32_0 = arith.constant 0 : i32
    %c0_i32_1 = arith.constant 0 : i32
    return %c0_i32, %c0_i32_0 : i32, i32
  }
  func.func @transform_5(%arg0: i32, %arg1: i32) -> (i32, i32) {
    %c0_i32 = arith.constant 0 : i32
    %c0_i32_0 = arith.constant 0 : i32
    return %arg0, %c0_i32 : i32, i32
  }
}

</mosaic_0001>

<llo_original>
// kernel: tpu_custom_call.1
$region0: #{tpu_custom_call.1}
  #allocation0 [shape = 'u32[]', space=smem, size = 0x4, offset = 0x4, fixed_abs, tag = 'smem constant byte address 0x4 - core index']
  #allocation1 [shape = 'u32[72,128]{1,0:T(1,128)}', space=vmem, size = 0x9000, scoped, tag = 'internal scratch']
  #allocation2 [shape = 'f32[16,128]{1,0:T(8,128)}', space=vmem, size = 0x2000, scoped, tag = 'scratch operand']
  %s0 = inlined_call_operand.vmem [shape: s32[32,32,1], index: 0, kind: input, shape index: {}]
  %s1 = inlined_call_operand.vmem [shape: f32[128,128], index: 1, kind: input, shape index: {}]
  %s2 = inlined_call_operand.vmem [shape: f32[1,128], index: 2, kind: input, shape index: {}]
  %s3 = inlined_call_operand.vmem [shape: f32[128,128], index: 3, kind: input, shape index: {}]
  %s4 = inlined_call_operand.vmem [shape: f32[1,128], index: 4, kind: input, shape index: {}]
  %s5 = inlined_call_operand.hbm [shape: f32[32,128], index: 5, kind: output, shape index: {}]
  %s6 = sld [smem:[#allocation0]]
  $region99: #{tpu_custom_call.1} parent=0
    _
  %s8 = ssub.s32 1, %s6
  %s9 = scalar_select 0, %s8, %s6
  $region1: #{tpu_custom_call.1} parent=0
    #allocation3 [shape = 'u8[262144]{0}', space=vmem, size = 0x40000, scoped, tag = 'input window, operand 0']
    #allocation4 [shape = 'u8[16384]{0}', space=vmem, size = 0x4000, scoped, tag = 'output window, operand 0']
    #allocation5 [shape = 's32[2]{0}', space=sflag, size = 0x8, scoped, tag = 'scoped memory for tpu_custom_call.1']
    %10 = vsyncpa [#allocation5], 0
    %s11 = scalar_lea.sflag [#allocation5], 1
    %12 = vsyncpa %s11, 0
    loop: start=0, step=1, limit=6
    $region2: #{tpu_custom_call.1} parent=1 // loop_pre_header
      _
    $region3: #{tpu_custom_call.1} parent=1 // loop_header
      %s14 = sphi 0, %s18
      %p15 = scmp.ge.s32.totalorder %s14, 6
      %s21 = sphi 0, %s33
      %s22 = sphi 0, %s29
      %s23 = sphi 0, %s21
      %s24 = sphi 0, %s22
      %s25 = sphi 0, %s23
      %s26 = sphi 0, %s24
      %s38 = sphi 0, %s40
      %s41 = sphi 0, %s38
      %s42 = sphi 0, %s41
      %s58 = sphi 0, %s42
      %s62 = sphi 0, %s62
      %s64 = sphi 0, %s62
      %s65 = sphi 0, %s64
      %s79 = sphi 0, %s65
      %s83 = sphi 0, %s83
      %s85 = sphi 0, %s83
      %s86 = sphi 0, %s85
      %s100 = sphi 0, %s86
      %s104 = sphi 0, %s104
      %s106 = sphi 0, %s104
      %s107 = sphi 0, %s106
      %s121 = sphi 0, %s107
      %s125 = sphi 0, %s125
      %s127 = sphi 0, %s125
      %s128 = sphi 0, %s127
      %s142 = sphi 0, %s128
      %s148 = sphi 0, %s150
      %s151 = sphi 0, %s148
      %s152 = sphi 0, %s151
      %s168 = sphi 0, %s152
    $region4: #{tpu_custom_call.1} parent=1 // loop_header_branch
      %17 = sbr.rel (%p15) target = $region8
    $region5: #{tpu_custom_call.1} parent=1 // loop_body
      %s19 = ssub.s32 %s14, 1
      %s20 = ssub.s32 %s14, 2
      %s27 = sadd.s32 1, %s22
      %p28 = scmp.ge.s32.totalorder %s27, 2
      %s29 = scalar_select %p28, 0, %s27
      %s30 = sadd.s32 1, %s21
      %s31 = scalar_select %p28, %s30, %s21
      %p32 = scmp.ge.s32.totalorder %s31, 2
      %s33 = scalar_select %p32, 0, %s31
      %s34 = ssub.s32 %s21, %s33
      %s35 = ssub.s32 %s22, %s29
      %s36 = sor.u32 %s34, %s35
      %p37 = scmp.eq.s32.totalorder %s36, 0
      %s39 = sadd.s32 %s38, 1
      %s40 = scalar_select %p37, %s38, %s39
      %p43 = pneg %p37
      %p44 = scmp.eq.s32.totalorder %s14, 3
      %p45 = por %p43, %p44
      %p46 = scmp.ne.s32.totalorder %s38, %s41
      %p47 = scmp.eq.s32.totalorder %s14, 0
      %p48 = por %p46, %p47
      %p49 = scmp.ne.s32.totalorder %s38, %s41
      %p50 = scmp.eq.s32.totalorder %s19, 3
      %p51 = por %p49, %p50
      %p52 = scmp.ne.s32.totalorder %s41, %s42
      %p53 = scmp.eq.s32.totalorder %s19, 0
      %p54 = por %p52, %p53
      %p55 = scmp.ne.s32.totalorder %s41, %s42
      %p56 = scmp.eq.s32.totalorder %s20, 3
      %p57 = por %p55, %p56
      %p59 = scmp.ne.s32.totalorder %s42, %s58
      %p60 = scmp.eq.s32.totalorder %s20, 0
      %p61 = por %p59, %p60
      %s63 = sadd.s32 %s62, 1
      %p66 = scmp.eq.s32.totalorder %s14, 3
      %p67 = scmp.ne.s32.totalorder %s62, %s64
      %p68 = scmp.eq.s32.totalorder %s14, 0
      %p69 = por %p67, %p68
      %p70 = scmp.ne.s32.totalorder %s62, %s64
      %p71 = scmp.eq.s32.totalorder %s19, 3
      %p72 = por %p70, %p71
      %p73 = scmp.ne.s32.totalorder %s64, %s65
      %p74 = scmp.eq.s32.totalorder %s19, 0
      %p75 = por %p73, %p74
      %p76 = scmp.ne.s32.totalorder %s64, %s65
      %p77 = scmp.eq.s32.totalorder %s20, 3
      %p78 = por %p76, %p77
      %p80 = scmp.ne.s32.totalorder %s65, %s79
      %p81 = scmp.eq.s32.totalorder %s20, 0
      %p82 = por %p80, %p81
      %s84 = sadd.s32 %s83, 1
      %p87 = scmp.eq.s32.totalorder %s14, 3
      %p88 = scmp.ne.s32.totalorder %s83, %s85
      %p89 = scmp.eq.s32.totalorder %s14, 0
      %p90 = por %p88, %p89
      %p91 = scmp.ne.s32.totalorder %s83, %s85
      %p92 = scmp.eq.s32.totalorder %s19, 3
      %p93 = por %p91, %p92
      %p94 = scmp.ne.s32.totalorder %s85, %s86
      %p95 = scmp.eq.s32.totalorder %s19, 0
      %p96 = por %p94, %p95
      %p97 = scmp.ne.s32.totalorder %s85, %s86
      %p98 = scmp.eq.s32.totalorder %s20, 3
      %p99 = por %p97, %p98
      %p101 = scmp.ne.s32.totalorder %s86, %s100
      %p102 = scmp.eq.s32.totalorder %s20, 0
      %p103 = por %p101, %p102
      %s105 = sadd.s32 %s104, 1
      %p108 = scmp.eq.s32.totalorder %s14, 3
      %p109 = scmp.ne.s32.totalorder %s104, %s106
      %p110 = scmp.eq.s32.totalorder %s14, 0
      %p111 = por %p109, %p110
      %p112 = scmp.ne.s32.totalorder %s104, %s106
      %p113 = scmp.eq.s32.totalorder %s19, 3
      %p114 = por %p112, %p113
      %p115 = scmp.ne.s32.totalorder %s106, %s107
      %p116 = scmp.eq.s32.totalorder %s19, 0
      %p117 = por %p115, %p116
      %p118 = scmp.ne.s32.totalorder %s106, %s107
      %p119 = scmp.eq.s32.totalorder %s20, 3
      %p120 = por %p118, %p119
      %p122 = scmp.ne.s32.totalorder %s107, %s121
      %p123 = scmp.eq.s32.totalorder %s20, 0
      %p124 = por %p122, %p123
      %s126 = sadd.s32 %s125, 1
      %p129 = scmp.eq.s32.totalorder %s14, 3
      %p130 = scmp.ne.s32.totalorder %s125, %s127
      %p131 = scmp.eq.s32.totalorder %s14, 0
      %p132 = por %p130, %p131
      %p133 = scmp.ne.s32.totalorder %s125, %s127
      %p134 = scmp.eq.s32.totalorder %s19, 3
      %p135 = por %p133, %p134
      %p136 = scmp.ne.s32.totalorder %s127, %s128
      %p137 = scmp.eq.s32.totalorder %s19, 0
      %p138 = por %p136, %p137
      %p139 = scmp.ne.s32.totalorder %s127, %s128
      %p140 = scmp.eq.s32.totalorder %s20, 3
      %p141 = por %p139, %p140
      %p143 = scmp.ne.s32.totalorder %s128, %s142
      %p144 = scmp.eq.s32.totalorder %s20, 0
      %p145 = por %p143, %p144
      %s146 = ssub.s32 %s21, %s33
      %p147 = scmp.eq.s32.totalorder %s146, 0
      %s149 = sadd.s32 %s148, 1
      %s150 = scalar_select %p147, %s148, %s149
      %p153 = pneg %p147
      %p154 = scmp.eq.s32.totalorder %s14, 3
      %p155 = por %p153, %p154
      %p156 = scmp.ne.s32.totalorder %s148, %s151
      %p157 = scmp.eq.s32.totalorder %s14, 0
      %p158 = por %p156, %p157
      %p159 = scmp.ne.s32.totalorder %s148, %s151
      %p160 = scmp.eq.s32.totalorder %s19, 3
      %p161 = por %p159, %p160
      %p162 = scmp.ne.s32.totalorder %s151, %s152
      %p163 = scmp.eq.s32.totalorder %s19, 0
      %p164 = por %p162, %p163
      %p165 = scmp.ne.s32.totalorder %s151, %s152
      %p166 = scmp.eq.s32.totalorder %s20, 3
      %p167 = por %p165, %p166
      %p169 = scmp.ne.s32.totalorder %s152, %s168
      %p170 = scmp.eq.s32.totalorder %s20, 0
      %p171 = por %p169, %p170
      %p172 = scmp.le.s32.totalorder 1, %s14
      %p173 = scmp.lt.s32.totalorder %s14, 5
      %p174 = pnand %p172, %p173
      %p175 = pneg %p174
      // Predicated region
      $region9: #{tpu_custom_call.1} parent=5 // pred_check
        _
      $region10: #{tpu_custom_call.1} parent=5 // pred_check_branch
        %177 = sbr.rel (%p174) target = $region12
      $region11: #{tpu_custom_call.1} parent=5 // pred_region
        %s178 = ssub.s32 %s14, 1
        // Predicated region
        $region13: #{tpu_custom_call.1} parent=11 // pred_check
          %p179 = pneg %p75
        $region14: #{tpu_custom_call.1} parent=11 // pred_check_branch
          %181 = sbr.rel (%p179) target = $region16
        $region15: #{tpu_custom_call.1} parent=11 // pred_region
          _
        $region16: #{tpu_custom_call.1} parent=11 // pred_fallthru
          _
        // Predicated region
        $region17: #{tpu_custom_call.1} parent=11 // pred_check
          %p182 = pneg %p96
        $region18: #{tpu_custom_call.1} parent=11 // pred_check_branch
          %184 = sbr.rel (%p182) target = $region20
        $region19: #{tpu_custom_call.1} parent=11 // pred_region
          _
        $region20: #{tpu_custom_call.1} parent=11 // pred_fallthru
          _
        // Predicated region
        $region21: #{tpu_custom_call.1} parent=11 // pred_check
          %p185 = pneg %p117
        $region22: #{tpu_custom_call.1} parent=11 // pred_check_branch
          %187 = sbr.rel (%p185) target = $region24
        $region23: #{tpu_custom_call.1} parent=11 // pred_region
          _
        $region24: #{tpu_custom_call.1} parent=11 // pred_fallthru
          _
        // Predicated region
        $region25: #{tpu_custom_call.1} parent=11 // pred_check
          %p188 = pneg %p138
        $region26: #{tpu_custom_call.1} parent=11 // pred_check_branch
          %190 = sbr.rel (%p188) target = $region28
        $region27: #{tpu_custom_call.1} parent=11 // pred_region
          _
        $region28: #{tpu_custom_call.1} parent=11 // pred_fallthru
          _
      $region12: #{tpu_custom_call.1} parent=5 // pred_fallthru
        _
      %p191 = scmp.lt.s32.totalorder %s14, 4
      // Predicated region
      $region29: #{tpu_custom_call.1} parent=5 // pred_check
        %p192 = pneg %p191
      $region30: #{tpu_custom_call.1} parent=5 // pred_check_branch
        %194 = sbr.rel (%p192) target = $region32
      $region31: #{tpu_custom_call.1} parent=5 // pred_region
        // Predicated region
        $region33: #{tpu_custom_call.1} parent=31 // pred_check
          %p195 = pneg %p48
        $region34: #{tpu_custom_call.1} parent=31 // pred_check_branch
          %197 = sbr.rel (%p195) target = $region36
        $region35: #{tpu_custom_call.1} parent=31 // pred_region
          %s198 = sand.u32 %s38, 1
          %s199 = sand.u32 %s38, 1
          %s200 = smul.addr %s199, 256
          %s201 = scalar_lea.vmem [#allocation3], %s200
          %s202 = smul.u32 16, %s21
          %s203 = smul.u32 2, %s22
          %s204 = smul.addr %s202, 4
          %s205 = sadd.s32 %s203, %s204
          %s206 = smul.addr %s205, 8
          %s207 = scalar_lea.vmem %s0, %s206
          // Predicated region
          $region37: #{tpu_custom_call.1} parent=35 // pred_check
            _
          $region38: #{tpu_custom_call.1} parent=35 // pred_check_branch
            %209 = sbr.rel (0) target = $region40
          $region39: #{tpu_custom_call.1} parent=35 // pred_region
            // Predicated region
            $region41: #{tpu_custom_call.1} parent=39 // pred_check
              _
            $region42: #{tpu_custom_call.1} parent=39 // pred_check_branch
              %211 = sbr.rel (0) target = $region44
            $region43: #{tpu_custom_call.1} parent=39 // pred_region
              // Predicated region
              $region56: #{tpu_custom_call.1} parent=43 // pred_check
                _
              $region57: #{tpu_custom_call.1} parent=43 // pred_check_branch
                %289 = sbr.rel (0) target = $region59
              $region58: #{tpu_custom_call.1} parent=43 // pred_region
                loop: start=0, step=1, limit=1
                $region60: #{tpu_custom_call.1} parent=58 // loop_pre_header
                  _
                $region61: #{tpu_custom_call.1} parent=58 // loop_header
                  %s291 = sphi 0, %s295
                  %p292 = scmp.ge.s32.totalorder %s291, 1
                  %s296 = sphi %s207, %s207
                  %s297 = sphi %s201, %s201
                $region62: #{tpu_custom_call.1} parent=58 // loop_header_branch
                  %294 = sbr.rel (%p292) target = $region66
                $region63: #{tpu_custom_call.1} parent=58 // loop_body
                  %v298 = vld [vmem:[%s296] sm:$0xff]
                  %299 = vst [vmem:[%s297] sm:$0xff] %v298
                  %v300 = vld [vmem:[%s296 + $0x8] sm:$0xff]
                  %301 = vst [vmem:[%s297 + $0x8] sm:$0xff] %v300
                  %v302 = vld [vmem:[%s296 + $0x20] sm:$0xff]
                  %303 = vst [vmem:[%s297 + $0x10] sm:$0xff] %v302
                  %v304 = vld [vmem:[%s296 + $0x28] sm:$0xff]
                  %305 = vst [vmem:[%s297 + $0x18] sm:$0xff] %v304
                  %v306 = vld [vmem:[%s296 + $0x40] sm:$0xff]
                  %307 = vst [vmem:[%s297 + $0x20] sm:$0xff] %v306
                  %v308 = vld [vmem:[%s296 + $0x48] sm:$0xff]
                  %309 = vst [vmem:[%s297 + $0x28] sm:$0xff] %v308
                  %v310 = vld [vmem:[%s296 + $0x60] sm:$0xff]
                  %311 = vst [vmem:[%s297 + $0x30] sm:$0xff] %v310
                  %v312 = vld [vmem:[%s296 + $0x68] sm:$0xff]
                  %313 = vst [vmem:[%s297 + $0x38] sm:$0xff] %v312
                  %v314 = vld [vmem:[%s296 + $0x80] sm:$0xff]
                  %315 = vst [vmem:[%s297 + $0x40] sm:$0xff] %v314
                  %v316 = vld [vmem:[%s296 + $0x88] sm:$0xff]
                  %317 = vst [vmem:[%s297 + $0x48] sm:$0xff] %v316
                  %v318 = vld [vmem:[%s296 + $0xa0] sm:$0xff]
                  %319 = vst [vmem:[%s297 + $0x50] sm:$0xff] %v318
                  %v320 = vld [vmem:[%s296 + $0xa8] sm:$0xff]
                  %321 = vst [vmem:[%s297 + $0x58] sm:$0xff] %v320
                  %v322 = vld [vmem:[%s296 + $0xc0] sm:$0xff]
                  %323 = vst [vmem:[%s297 + $0x60] sm:$0xff] %v322
                  %v324 = vld [vmem:[%s296 + $0xc8] sm:$0xff]
                  %325 = vst [vmem:[%s297 + $0x68] sm:$0xff] %v324
                  %v326 = vld [vmem:[%s296 + $0xe0] sm:$0xff]
                  %327 = vst [vmem:[%s297 + $0x70] sm:$0xff] %v326
                  %v328 = vld [vmem:[%s296 + $0xe8] sm:$0xff]
                  %329 = vst [vmem:[%s297 + $0x78] sm:$0xff] %v328
                  %v330 = vld [vmem:[%s296 + $0x100] sm:$0xff]
                  %331 = vst [vmem:[%s297 + $0x80] sm:$0xff] %v330
                  %v332 = vld [vmem:[%s296 + $0x108] sm:$0xff]
                  %333 = vst [vmem:[%s297 + $0x88] sm:$0xff] %v332
                  %v334 = vld [vmem:[%s296 + $0x120] sm:$0xff]
                  %335 = vst [vmem:[%s297 + $0x90] sm:$0xff] %v334
                  %v336 = vld [vmem:[%s296 + $0x128] sm:$0xff]
                  %337 = vst [vmem:[%s297 + $0x98] sm:$0xff] %v336
                  %v338 = vld [vmem:[%s296 + $0x140] sm:$0xff]
                  %339 = vst [vmem:[%s297 + $0xa0] sm:$0xff] %v338
                  %v340 = vld [vmem:[%s296 + $0x148] sm:$0xff]
                  %341 = vst [vmem:[%s297 + $0xa8] sm:$0xff] %v340
                  %v342 = vld [vmem:[%s296 + $0x160] sm:$0xff]
                  %343 = vst [vmem:[%s297 + $0xb0] sm:$0xff] %v342
                  %v344 = vld [vmem:[%s296 + $0x168] sm:$0xff]
                  %345 = vst [vmem:[%s297 + $0xb8] sm:$0xff] %v344
                  %v346 = vld [vmem:[%s296 + $0x180] sm:$0xff]
                  %347 = vst [vmem:[%s297 + $0xc0] sm:$0xff] %v346
                  %v348 = vld [vmem:[%s296 + $0x188] sm:$0xff]
                  %349 = vst [vmem:[%s297 + $0xc8] sm:$0xff] %v348
                  %v350 = vld [vmem:[%s296 + $0x1a0] sm:$0xff]
                  %351 = vst [vmem:[%s297 + $0xd0] sm:$0xff] %v350
                  %v352 = vld [vmem:[%s296 + $0x1a8] sm:$0xff]
                  %353 = vst [vmem:[%s297 + $0xd8] sm:$0xff] %v352
                  %v354 = vld [vmem:[%s296 + $0x1c0] sm:$0xff]
                  %355 = vst [vmem:[%s297 + $0xe0] sm:$0xff] %v354
                  %v356 = vld [vmem:[%s296 + $0x1c8] sm:$0xff]
                  %357 = vst [vmem:[%s297 + $0xe8] sm:$0xff] %v356
                  %v358 = vld [vmem:[%s296 + $0x1e0] sm:$0xff]
                  %359 = vst [vmem:[%s297 + $0xf0] sm:$0xff] %v358
                  %v360 = vld [vmem:[%s296 + $0x1e8] sm:$0xff]
                  %361 = vst [vmem:[%s297 + $0xf8] sm:$0xff] %v360
                $region64: #{tpu_custom_call.1} parent=58 // loop_footer
                  %s295 = sadd.s32 1, %s291
                $region65: #{tpu_custom_call.1} parent=58 // loop_footer_branch
                  %290 = sbr.rel target = $region61
                $region66: #{tpu_custom_call.1} parent=58 // loop_exit
                  _
              $region59: #{tpu_custom_call.1} parent=43 // pred_fallthru
                _
              // Predicated region
              $region67: #{tpu_custom_call.1} parent=43 // pred_check
                _
              $region68: #{tpu_custom_call.1} parent=43 // pred_check_branch
                %363 = sbr.rel target = $region70
              $region69: #{tpu_custom_call.1} parent=43 // pred_region
                _
              $region70: #{tpu_custom_call.1} parent=43 // pred_fallthru
                _
            $region44: #{tpu_custom_call.1} parent=39 // pred_fallthru
              _
            // Predicated region
            $region45: #{tpu_custom_call.1} parent=39 // pred_check
              _
            $region46: #{tpu_custom_call.1} parent=39 // pred_check_branch
              %213 = sbr.rel target = $region48
            $region47: #{tpu_custom_call.1} parent=39 // pred_region
              %s215 = ssub.s32 256, 1
              loop: start=0, step=1, limit=1
              $region49: #{tpu_custom_call.1} parent=47 // loop_pre_header
                _
              $region50: #{tpu_custom_call.1} parent=47 // loop_header
                %s217 = sphi 0, %s221
                %p218 = scmp.ge.s32.totalorder %s217, 1
                %s222 = sphi %s207, %s207
                %s223 = sphi %s201, %s201
              $region51: #{tpu_custom_call.1} parent=47 // loop_header_branch
                %220 = sbr.rel (%p218) target = $region55
              $region52: #{tpu_custom_call.1} parent=47 // loop_body
                %v224 = vld [vmem:[%s222] sm:%s215]
                %225 = vst [vmem:[%s223] sm:%s215] %v224
                %v226 = vld [vmem:[%s222 + $0x8] sm:%s215]
                %227 = vst [vmem:[%s223 + $0x8] sm:%s215] %v226
                %v228 = vld [vmem:[%s222 + $0x20] sm:%s215]
                %229 = vst [vmem:[%s223 + $0x10] sm:%s215] %v228
                %v230 = vld [vmem:[%s222 + $0x28] sm:%s215]
                %231 = vst [vmem:[%s223 + $0x18] sm:%s215] %v230
                %v232 = vld [vmem:[%s222 + $0x40] sm:%s215]
                %233 = vst [vmem:[%s223 + $0x20] sm:%s215] %v232
                %v234 = vld [vmem:[%s222 + $0x48] sm:%s215]
                %235 = vst [vmem:[%s223 + $0x28] sm:%s215] %v234
                %v236 = vld [vmem:[%s222 + $0x60] sm:%s215]
                %237 = vst [vmem:[%s223 + $0x30] sm:%s215] %v236
                %v238 = vld [vmem:[%s222 + $0x68] sm:%s215]
                %239 = vst [vmem:[%s223 + $0x38] sm:%s215] %v238
                %v240 = vld [vmem:[%s222 + $0x80] sm:%s215]
                %241 = vst [vmem:[%s223 + $0x40] sm:%s215] %v240
                %v242 = vld [vmem:[%s222 + $0x88] sm:%s215]
                %243 = vst [vmem:[%s223 + $0x48] sm:%s215] %v242
                %v244 = vld [vmem:[%s222 + $0xa0] sm:%s215]
                %245 = vst [vmem:[%s223 + $0x50] sm:%s215] %v244
                %v246 = vld [vmem:[%s222 + $0xa8] sm:%s215]
                %247 = vst [vmem:[%s223 + $0x58] sm:%s215] %v246
                %v248 = vld [vmem:[%s222 + $0xc0] sm:%s215]
                %249 = vst [vmem:[%s223 + $0x60] sm:%s215] %v248
                %v250 = vld [vmem:[%s222 + $0xc8] sm:%s215]
                %251 = vst [vmem:[%s223 + $0x68] sm:%s215] %v250
                %v252 = vld [vmem:[%s222 + $0xe0] sm:%s215]
                %253 = vst [vmem:[%s223 + $0x70] sm:%s215] %v252
                %v254 = vld [vmem:[%s222 + $0xe8] sm:%s215]
                %255 = vst [vmem:[%s223 + $0x78] sm:%s215] %v254
                %v256 = vld [vmem:[%s222 + $0x100] sm:%s215]
                %257 = vst [vmem:[%s223 + $0x80] sm:%s215] %v256
                %v258 = vld [vmem:[%s222 + $0x108] sm:%s215]
                %259 = vst [vmem:[%s223 + $0x88] sm:%s215] %v258
                %v260 = vld [vmem:[%s222 + $0x120] sm:%s215]
                %261 = vst [vmem:[%s223 + $0x90] sm:%s215] %v260
                %v262 = vld [vmem:[%s222 + $0x128] sm:%s215]
                %263 = vst [vmem:[%s223 + $0x98] sm:%s215] %v262
                %v264 = vld [vmem:[%s222 + $0x140] sm:%s215]
                %265 = vst [vmem:[%s223 + $0xa0] sm:%s215] %v264
                %v266 = vld [vmem:[%s222 + $0x148] sm:%s215]
                %267 = vst [vmem:[%s223 + $0xa8] sm:%s215] %v266
                %v268 = vld [vmem:[%s222 + $0x160] sm:%s215]
                %269 = vst [vmem:[%s223 + $0xb0] sm:%s215] %v268
                %v270 = vld [vmem:[%s222 + $0x168] sm:%s215]
                %271 = vst [vmem:[%s223 + $0xb8] sm:%s215] %v270
                %v272 = vld [vmem:[%s222 + $0x180] sm:%s215]
                %273 = vst [vmem:[%s223 + $0xc0] sm:%s215] %v272
                %v274 = vld [vmem:[%s222 + $0x188] sm:%s215]
                %275 = vst [vmem:[%s223 + $0xc8] sm:%s215] %v274
                %v276 = vld [vmem:[%s222 + $0x1a0] sm:%s215]
                %277 = vst [vmem:[%s223 + $0xd0] sm:%s215] %v276
                %v278 = vld [vmem:[%s222 + $0x1a8] sm:%s215]
                %279 = vst [vmem:[%s223 + $0xd8] sm:%s215] %v278
                %v280 = vld [vmem:[%s222 + $0x1c0] sm:%s215]
                %281 = vst [vmem:[%s223 + $0xe0] sm:%s215] %v280
                %v282 = vld [vmem:[%s222 + $0x1c8] sm:%s215]
                %283 = vst [vmem:[%s223 + $0xe8] sm:%s215] %v282
                %v284 = vld [vmem:[%s222 + $0x1e0] sm:%s215]
                %285 = vst [vmem:[%s223 + $0xf0] sm:%s215] %v284
                %v286 = vld [vmem:[%s222 + $0x1e8] sm:%s215]
                %287 = vst [vmem:[%s223 + $0xf8] sm:%s215] %v286
              $region53: #{tpu_custom_call.1} parent=47 // loop_footer
                %s221 = sadd.s32 1, %s217
              $region54: #{tpu_custom_call.1} parent=47 // loop_footer_branch
                %216 = sbr.rel target = $region50
              $region55: #{tpu_custom_call.1} parent=47 // loop_exit
                _
            $region48: #{tpu_custom_call.1} parent=39 // pred_fallthru
              _
          $region40: #{tpu_custom_call.1} parent=35 // pred_fallthru
            _
          %364 = vnop
        $region36: #{tpu_custom_call.1} parent=31 // pred_fallthru
          _
      $region32: #{tpu_custom_call.1} parent=5 // pred_fallthru
        _
      %p365 = scmp.le.s32.totalorder 1, %s14
      %p366 = scmp.lt.s32.totalorder %s14, 5
      %p367 = pnand %p365, %p366
      %p368 = pneg %p367
      // Predicated region
      $region71: #{tpu_custom_call.1} parent=5 // pred_check
        _
      $region72: #{tpu_custom_call.1} parent=5 // pred_check_branch
        %370 = sbr.rel (%p367) target = $region74
      $region73: #{tpu_custom_call.1} parent=5 // pred_region
        %s371 = ssub.s32 %s14, 1
        %s372 = sand.u32 %s41, 1
        %s373 = sand.u32 %s41, 1
        %s374 = smul.addr %s373, 256
        %s375 = scalar_lea.vmem [#allocation3], %s374
        // Predicated region
        $region75: #{tpu_custom_call.1} parent=73 // pred_check
          %p376 = pneg %p54
        $region76: #{tpu_custom_call.1} parent=73 // pred_check_branch
          %378 = sbr.rel (%p376) target = $region78
        $region77: #{tpu_custom_call.1} parent=73 // pred_region
          _
        $region78: #{tpu_custom_call.1} parent=73 // pred_fallthru
          _
        %s379 = sand.u32 %s41, 1
        %s380 = sand.u32 %s41, 1
        %s381 = smul.addr %s380, 256
        %s382 = scalar_lea.vmem [#allocation3], %s381
        %p383 = pneg %p54
        %p384 = pneg %p51
        %p385 = pneg %p75
        %p386 = pneg %p72
        %p387 = pneg %p96
        %p388 = pneg %p93
        %p389 = pneg %p117
        %p390 = pneg %p114
        %p391 = pneg %p138
        %p392 = pneg %p135
        %p393 = pneg %p164
        %p394 = pneg %p161
        %s395 = sand.u32 %s151, 1
        %s396 = scalar_lea.sflag [#allocation5], %s395
        %s397 = sand.u32 %s151, 1
        %s398 = smul.addr %s397, 16
        %s399 = scalar_lea.vmem [#allocation4], %s398
        %s400 = smul.u32 16, %s23
        %s401 = smul.u32 2, %s24
        %s402 = smul.u32 2, %s23
        %p403 = scmp.eq.s32.totalorder %s24, 0
        // Predicated region
        $region79: #{tpu_custom_call.1} parent=73 // pred_check
          %p404 = pneg %p403
        $region80: #{tpu_custom_call.1} parent=73 // pred_check_branch
          %406 = sbr.rel (%p404) target = $region82
        $region81: #{tpu_custom_call.1} parent=73 // pred_region
          %407 = vst [vmem:[#allocation2] sm:$0xff] 0.0
          %408 = vst [vmem:[#allocation2 + $0x8] sm:$0xff] 0.0
        $region82: #{tpu_custom_call.1} parent=73 // pred_fallthru
          _
        %v409 = vld [vmem:[%s375] sm:$0xff]
        %v410 = vld [vmem:[%s375 + $0x8] sm:$0xff]
        %v411 = vld [vmem:[%s375 + $0x10] sm:$0xff]
        %v412 = vld [vmem:[%s375 + $0x18] sm:$0xff]
        %v413 = vld [vmem:[%s375 + $0x20] sm:$0xff]
        %v414 = vld [vmem:[%s375 + $0x28] sm:$0xff]
        %v415 = vld [vmem:[%s375 + $0x30] sm:$0xff]
        %v416 = vld [vmem:[%s375 + $0x38] sm:$0xff]
        %v417 = vld [vmem:[%s375 + $0x40] sm:$0xff]
        %v418 = vld [vmem:[%s375 + $0x48] sm:$0xff]
        %v419 = vld [vmem:[%s375 + $0x50] sm:$0xff]
        %v420 = vld [vmem:[%s375 + $0x58] sm:$0xff]
        %v421 = vld [vmem:[%s375 + $0x60] sm:$0xff]
        %v422 = vld [vmem:[%s375 + $0x68] sm:$0xff]
        %v423 = vld [vmem:[%s375 + $0x70] sm:$0xff]
        %v424 = vld [vmem:[%s375 + $0x78] sm:$0xff]
        %v425 = vld [vmem:[%s375 + $0x80] sm:$0xff]
        %v426 = vld [vmem:[%s375 + $0x88] sm:$0xff]
        %v427 = vld [vmem:[%s375 + $0x90] sm:$0xff]
        %v428 = vld [vmem:[%s375 + $0x98] sm:$0xff]
        %v429 = vld [vmem:[%s375 + $0xa0] sm:$0xff]
        %v430 = vld [vmem:[%s375 + $0xa8] sm:$0xff]
        %v431 = vld [vmem:[%s375 + $0xb0] sm:$0xff]
        %v432 = vld [vmem:[%s375 + $0xb8] sm:$0xff]
        %v433 = vld [vmem:[%s375 + $0xc0] sm:$0xff]
        %v434 = vld [vmem:[%s375 + $0xc8] sm:$0xff]
        %v435 = vld [vmem:[%s375 + $0xd0] sm:$0xff]
        %v436 = vld [vmem:[%s375 + $0xd8] sm:$0xff]
        %v437 = vld [vmem:[%s375 + $0xe0] sm:$0xff]
        %v438 = vld [vmem:[%s375 + $0xe8] sm:$0xff]
        %v439 = vld [vmem:[%s375 + $0xf0] sm:$0xff]
        %v440 = vld [vmem:[%s375 + $0xf8] sm:$0xff]
        %v441 = vlaneseq
        %v442 = vand.u32 %v441, 127
        %443 = vset.pattern.permute.xlu0 0
        %444 = vperm.xlu0 %443, %v409
        %v445 = vpop.permute.xlu0 %444
        %446 = vset.pattern.permute.xlu0 0
        %447 = vperm.xlu0 %446, %v410
        %v448 = vpop.permute.xlu0 %447
        %449 = vset.pattern.permute.xlu0 0
        %450 = vperm.xlu0 %449, %v411
        %v451 = vpop.permute.xlu0 %450
        %452 = vset.pattern.permute.xlu0 0
        %453 = vperm.xlu0 %452, %v412
        %v454 = vpop.permute.xlu0 %453
        %455 = vset.pattern.permute.xlu0 0
        %456 = vperm.xlu0 %455, %v413
        %v457 = vpop.permute.xlu0 %456
        %458 = vset.pattern.permute.xlu0 0
        %459 = vperm.xlu0 %458, %v414
        %v460 = vpop.permute.xlu0 %459
        %461 = vset.pattern.permute.xlu0 0
        %462 = vperm.xlu0 %461, %v415
        %v463 = vpop.permute.xlu0 %462
        %464 = vset.pattern.permute.xlu0 0
        %465 = vperm.xlu0 %464, %v416
        %v466 = vpop.permute.xlu0 %465
        %467 = vset.pattern.permute.xlu0 0
        %468 = vperm.xlu0 %467, %v417
        %v469 = vpop.permute.xlu0 %468
        %470 = vset.pattern.permute.xlu0 0
        %471 = vperm.xlu0 %470, %v418
        %v472 = vpop.permute.xlu0 %471
        %473 = vset.pattern.permute.xlu0 0
        %474 = vperm.xlu0 %473, %v419
        %v475 = vpop.permute.xlu0 %474
        %476 = vset.pattern.permute.xlu0 0
        %477 = vperm.xlu0 %476, %v420
        %v478 = vpop.permute.xlu0 %477
        %479 = vset.pattern.permute.xlu0 0
        %480 = vperm.xlu0 %479, %v421
        %v481 = vpop.permute.xlu0 %480
        %482 = vset.pattern.permute.xlu0 0
        %483 = vperm.xlu0 %482, %v422
        %v484 = vpop.permute.xlu0 %483
        %485 = vset.pattern.permute.xlu0 0
        %486 = vperm.xlu0 %485, %v423
        %v487 = vpop.permute.xlu0 %486
        %488 = vset.pattern.permute.xlu0 0
        %489 = vperm.xlu0 %488, %v424
        %v490 = vpop.permute.xlu0 %489
        %491 = vset.pattern.permute.xlu0 0
        %492 = vperm.xlu0 %491, %v425
        %v493 = vpop.permute.xlu0 %492
        %494 = vset.pattern.permute.xlu0 0
        %495 = vperm.xlu0 %494, %v426
        %v496 = vpop.permute.xlu0 %495
        %497 = vset.pattern.permute.xlu0 0
        %498 = vperm.xlu0 %497, %v427
        %v499 = vpop.permute.xlu0 %498
        %500 = vset.pattern.permute.xlu0 0
        %501 = vperm.xlu0 %500, %v428
        %v502 = vpop.permute.xlu0 %501
        %503 = vset.pattern.permute.xlu0 0
        %504 = vperm.xlu0 %503, %v429
        %v505 = vpop.permute.xlu0 %504
        %506 = vset.pattern.permute.xlu0 0
        %507 = vperm.xlu0 %506, %v430
        %v508 = vpop.permute.xlu0 %507
        %509 = vset.pattern.permute.xlu0 0
        %510 = vperm.xlu0 %509, %v431
        %v511 = vpop.permute.xlu0 %510
        %512 = vset.pattern.permute.xlu0 0
        %513 = vperm.xlu0 %512, %v432
        %v514 = vpop.permute.xlu0 %513
        %515 = vset.pattern.permute.xlu0 0
        %516 = vperm.xlu0 %515, %v433
        %v517 = vpop.permute.xlu0 %516
        %518 = vset.pattern.permute.xlu0 0
        %519 = vperm.xlu0 %518, %v434
        %v520 = vpop.permute.xlu0 %519
        %521 = vset.pattern.permute.xlu0 0
        %522 = vperm.xlu0 %521, %v435
        %v523 = vpop.permute.xlu0 %522
        %524 = vset.pattern.permute.xlu0 0
        %525 = vperm.xlu0 %524, %v436
        %v526 = vpop.permute.xlu0 %525
        %527 = vset.pattern.permute.xlu0 0
        %528 = vperm.xlu0 %527, %v437
        %v529 = vpop.permute.xlu0 %528
        %530 = vset.pattern.permute.xlu0 0
        %531 = vperm.xlu0 %530, %v438
        %v532 = vpop.permute.xlu0 %531
        %533 = vset.pattern.permute.xlu0 0
        %534 = vperm.xlu0 %533, %v439
        %v535 = vpop.permute.xlu0 %534
        %536 = vset.pattern.permute.xlu0 0
        %537 = vperm.xlu0 %536, %v440
        %v538 = vpop.permute.xlu0 %537
        %vm539 = vcmp.eq.s32.totalorder %v445, %v442
        %vm540 = vcmp.eq.s32.totalorder %v448, %v442
        %vm541 = vcmp.eq.s32.totalorder %v451, %v442
        %vm542 = vcmp.eq.s32.totalorder %v454, %v442
        %vm543 = vcmp.eq.s32.totalorder %v457, %v442
        %vm544 = vcmp.eq.s32.totalorder %v460, %v442
        %vm545 = vcmp.eq.s32.totalorder %v463, %v442
        %vm546 = vcmp.eq.s32.totalorder %v466, %v442
        %vm547 = vcmp.eq.s32.totalorder %v469, %v442
        %vm548 = vcmp.eq.s32.totalorder %v472, %v442
        %vm549 = vcmp.eq.s32.totalorder %v475, %v442
        %vm550 = vcmp.eq.s32.totalorder %v478, %v442
        %vm551 = vcmp.eq.s32.totalorder %v481, %v442
        %vm552 = vcmp.eq.s32.totalorder %v484, %v442
        %vm553 = vcmp.eq.s32.totalorder %v487, %v442
        %vm554 = vcmp.eq.s32.totalorder %v490, %v442
        %vm555 = vcmp.eq.s32.totalorder %v493, %v442
        %vm556 = vcmp.eq.s32.totalorder %v496, %v442
        %vm557 = vcmp.eq.s32.totalorder %v499, %v442
        %vm558 = vcmp.eq.s32.totalorder %v502, %v442
        %vm559 = vcmp.eq.s32.totalorder %v505, %v442
        %vm560 = vcmp.eq.s32.totalorder %v508, %v442
        %vm561 = vcmp.eq.s32.totalorder %v511, %v442
        %vm562 = vcmp.eq.s32.totalorder %v514, %v442
        %vm563 = vcmp.eq.s32.totalorder %v517, %v442
        %vm564 = vcmp.eq.s32.totalorder %v520, %v442
        %vm565 = vcmp.eq.s32.totalorder %v523, %v442
        %vm566 = vcmp.eq.s32.totalorder %v526, %v442
        %vm567 = vcmp.eq.s32.totalorder %v529, %v442
        %vm568 = vcmp.eq.s32.totalorder %v532, %v442
        %vm569 = vcmp.eq.s32.totalorder %v535, %v442
        %vm570 = vcmp.eq.s32.totalorder %v538, %v442
        %v571 = vsel %vm539, 1, 0
        %v572 = vsel %vm540, 1, 0
        %v573 = vsel %vm541, 1, 0
        %v574 = vsel %vm542, 1, 0
        %v575 = vsel %vm543, 1, 0
        %v576 = vsel %vm544, 1, 0
        %v577 = vsel %vm545, 1, 0
        %v578 = vsel %vm546, 1, 0
        %v579 = vsel %vm547, 1, 0
        %v580 = vsel %vm548, 1, 0
        %v581 = vsel %vm549, 1, 0
        %v582 = vsel %vm550, 1, 0
        %v583 = vsel %vm551, 1, 0
        %v584 = vsel %vm552, 1, 0
        %v585 = vsel %vm553, 1, 0
        %v586 = vsel %vm554, 1, 0
        %v587 = vsel %vm555, 1, 0
        %v588 = vsel %vm556, 1, 0
        %v589 = vsel %vm557, 1, 0
        %v590 = vsel %vm558, 1, 0
        %v591 = vsel %vm559, 1, 0
        %v592 = vsel %vm560, 1, 0
        %v593 = vsel %vm561, 1, 0
        %v594 = vsel %vm562, 1, 0
        %v595 = vsel %vm563, 1, 0
        %v596 = vsel %vm564, 1, 0
        %v597 = vsel %vm565, 1, 0
        %v598 = vsel %vm566, 1, 0
        %v599 = vsel %vm567, 1, 0
        %v600 = vsel %vm568, 1, 0
        %v601 = vsel %vm569, 1, 0
        %v602 = vsel %vm570, 1, 0
        %v603 = vcvt.s32.f32 %v571
        %v604 = vcvt.s32.f32 %v572
        %v605 = vcvt.s32.f32 %v573
        %v606 = vcvt.s32.f32 %v574
        %v607 = vcvt.s32.f32 %v575
        %v608 = vcvt.s32.f32 %v576
        %v609 = vcvt.s32.f32 %v577
        %v610 = vcvt.s32.f32 %v578
        %v611 = vcvt.s32.f32 %v579
        %v612 = vcvt.s32.f32 %v580
        %v613 = vcvt.s32.f32 %v581
        %v614 = vcvt.s32.f32 %v582
        %v615 = vcvt.s32.f32 %v583
        %v616 = vcvt.s32.f32 %v584
        %v617 = vcvt.s32.f32 %v585
        %v618 = vcvt.s32.f32 %v586
        %v619 = vcvt.s32.f32 %v587
        %v620 = vcvt.s32.f32 %v588
        %v621 = vcvt.s32.f32 %v589
        %v622 = vcvt.s32.f32 %v590
        %v623 = vcvt.s32.f32 %v591
        %v624 = vcvt.s32.f32 %v592
        %v625 = vcvt.s32.f32 %v593
        %v626 = vcvt.s32.f32 %v594
        %v627 = vcvt.s32.f32 %v595
        %v628 = vcvt.s32.f32 %v596
        %v629 = vcvt.s32.f32 %v597
        %v630 = vcvt.s32.f32 %v598
        %v631 = vcvt.s32.f32 %v599
        %v632 = vcvt.s32.f32 %v600
        %v633 = vcvt.s32.f32 %v601
        %v634 = vcvt.s32.f32 %v602
        %v635 = vld [vmem:[#allocation2] sm:$0xff]
        %v636 = vld [vmem:[#allocation2 + $0x8] sm:$0xff]
        %v637 = vadd.f32 %v603, %v604
        %v638 = vrot.slane %v637, 4
        %v639 = vadd.f32 %v637, %v638
        %v640 = vrot.slane %v639, 2
        %v641 = vadd.f32 %v639, %v640
        %v642 = vrot.slane %v641, 1
        %v643 = vadd.f32 %v641, %v642
        %v644 = vadd.f32 %v605, %v606
        %v645 = vrot.slane %v644, 4
        %v646 = vadd.f32 %v644, %v645
        %v647 = vrot.slane %v646, 2
        %v648 = vadd.f32 %v646, %v647
        %v649 = vrot.slane %v648, 1
        %v650 = vadd.f32 %v648, %v649
        %v651 = vadd.f32 %v607, %v608
        %v652 = vrot.slane %v651, 4
        %v653 = vadd.f32 %v651, %v652
        %v654 = vrot.slane %v653, 2
        %v655 = vadd.f32 %v653, %v654
        %v656 = vrot.slane %v655, 1
        %v657 = vadd.f32 %v655, %v656
        %v658 = vadd.f32 %v609, %v610
        %v659 = vrot.slane %v658, 4
        %v660 = vadd.f32 %v658, %v659
        %v661 = vrot.slane %v660, 2
        %v662 = vadd.f32 %v660, %v661
        %v663 = vrot.slane %v662, 1
        %v664 = vadd.f32 %v662, %v663
        %v665 = vadd.f32 %v611, %v612
        %v666 = vrot.slane %v665, 4
        %v667 = vadd.f32 %v665, %v666
        %v668 = vrot.slane %v667, 2
        %v669 = vadd.f32 %v667, %v668
        %v670 = vrot.slane %v669, 1
        %v671 = vadd.f32 %v669, %v670
        %v672 = vadd.f32 %v613, %v614
        %v673 = vrot.slane %v672, 4
        %v674 = vadd.f32 %v672, %v673
        %v675 = vrot.slane %v674, 2
        %v676 = vadd.f32 %v674, %v675
        %v677 = vrot.slane %v676, 1
        %v678 = vadd.f32 %v676, %v677
        %v679 = vadd.f32 %v615, %v616
        %v680 = vrot.slane %v679, 4
        %v681 = vadd.f32 %v679, %v680
        %v682 = vrot.slane %v681, 2
        %v683 = vadd.f32 %v681, %v682
        %v684 = vrot.slane %v683, 1
        %v685 = vadd.f32 %v683, %v684
        %v686 = vadd.f32 %v617, %v618
        %v687 = vrot.slane %v686, 4
        %v688 = vadd.f32 %v686, %v687
        %v689 = vrot.slane %v688, 2
        %v690 = vadd.f32 %v688, %v689
        %v691 = vrot.slane %v690, 1
        %v692 = vadd.f32 %v690, %v691
        %v693 = vadd.f32 %v619, %v620
        %v694 = vrot.slane %v693, 4
        %v695 = vadd.f32 %v693, %v694
        %v696 = vrot.slane %v695, 2
        %v697 = vadd.f32 %v695, %v696
        %v698 = vrot.slane %v697, 1
        %v699 = vadd.f32 %v697, %v698
        %v700 = vadd.f32 %v621, %v622
        %v701 = vrot.slane %v700, 4
        %v702 = vadd.f32 %v700, %v701
        %v703 = vrot.slane %v702, 2
        %v704 = vadd.f32 %v702, %v703
        %v705 = vrot.slane %v704, 1
        %v706 = vadd.f32 %v704, %v705
        %v707 = vadd.f32 %v623, %v624
        %v708 = vrot.slane %v707, 4
        %v709 = vadd.f32 %v707, %v708
        %v710 = vrot.slane %v709, 2
        %v711 = vadd.f32 %v709, %v710
        %v712 = vrot.slane %v711, 1
        %v713 = vadd.f32 %v711, %v712
        %v714 = vadd.f32 %v625, %v626
        %v715 = vrot.slane %v714, 4
        %v716 = vadd.f32 %v714, %v715
        %v717 = vrot.slane %v716, 2
        %v718 = vadd.f32 %v716, %v717
        %v719 = vrot.slane %v718, 1
        %v720 = vadd.f32 %v718, %v719
        %v721 = vadd.f32 %v627, %v628
        %v722 = vrot.slane %v721, 4
        %v723 = vadd.f32 %v721, %v722
        %v724 = vrot.slane %v723, 2
        %v725 = vadd.f32 %v723, %v724
        %v726 = vrot.slane %v725, 1
        %v727 = vadd.f32 %v725, %v726
        %v728 = vadd.f32 %v629, %v630
        %v729 = vrot.slane %v728, 4
        %v730 = vadd.f32 %v728, %v729
        %v731 = vrot.slane %v730, 2
        %v732 = vadd.f32 %v730, %v731
        %v733 = vrot.slane %v732, 1
        %v734 = vadd.f32 %v732, %v733
        %v735 = vadd.f32 %v631, %v632
        %v736 = vrot.slane %v735, 4
        %v737 = vadd.f32 %v735, %v736
        %v738 = vrot.slane %v737, 2
        %v739 = vadd.f32 %v737, %v738
        %v740 = vrot.slane %v739, 1
        %v741 = vadd.f32 %v739, %v740
        %v742 = vadd.f32 %v633, %v634
        %v743 = vrot.slane %v742, 4
        %v744 = vadd.f32 %v742, %v743
        %v745 = vrot.slane %v744, 2
        %v746 = vadd.f32 %v744, %v745
        %v747 = vrot.slane %v746, 1
        %v748 = vadd.f32 %v746, %v747
        %vm765 = vcmask 1041409
        %v766 = vsel %vm765, %v650, %v643
        %vm767 = vcmask 1042434
        %v768 = vsel %vm767, %v657, %v766
        %vm769 = vcmask 1043459
        %v770 = vsel %vm769, %v664, %v768
        %vm771 = vcmask 1044484
        %v772 = vsel %vm771, %v671, %v770
        %vm773 = vcmask 1045509
        %v774 = vsel %vm773, %v678, %v772
        %vm775 = vcmask 1046534
        %v776 = vsel %vm775, %v685, %v774
        %vm777 = vcmask 1047559
        %v778 = vsel %vm777, %v692, %v776
        %v779 = vsel %vm765, %v706, %v699
        %v780 = vsel %vm767, %v713, %v779
        %v781 = vsel %vm769, %v720, %v780
        %v782 = vsel %vm771, %v727, %v781
        %v783 = vsel %vm773, %v734, %v782
        %v784 = vsel %vm775, %v741, %v783
        %v785 = vsel %vm777, %v748, %v784
        %v788 = vadd.f32 %v635, %v778
        %v789 = vadd.f32 %v636, %v785
        %790 = vst [vmem:[#allocation2] sm:$0xff] %v788
        %791 = vst [vmem:[#allocation2 + $0x8] sm:$0xff] %v789
        %p792 = scmp.eq.s32.totalorder %s24, 1
        // Predicated region
        $region83: #{tpu_custom_call.1} parent=73 // pred_check
          %p793 = pneg %p792
        $region84: #{tpu_custom_call.1} parent=73 // pred_check_branch
          %795 = sbr.rel (%p793) target = $region86
        $region85: #{tpu_custom_call.1} parent=73 // pred_region
          %v796 = vld [vmem:[#allocation2] sm:$0xff]
          %v797 = vld [vmem:[#allocation2 + $0x8] sm:$0xff]
          %v798 = vld [vmem:[%s1] sm:$0xff]
          %v799 = vld [vmem:[%s1 + $0x8] sm:$0xff]
          %v800 = vld [vmem:[%s1 + $0x10] sm:$0xff]
          %v801 = vld [vmem:[%s1 + $0x18] sm:$0xff]
          %v802 = vld [vmem:[%s1 + $0x20] sm:$0xff]
          %v803 = vld [vmem:[%s1 + $0x28] sm:$0xff]
          %v804 = vld [vmem:[%s1 + $0x30] sm:$0xff]
          %v805 = vld [vmem:[%s1 + $0x38] sm:$0xff]
          %v806 = vld [vmem:[%s1 + $0x40] sm:$0xff]
          %v807 = vld [vmem:[%s1 + $0x48] sm:$0xff]
          %v808 = vld [vmem:[%s1 + $0x50] sm:$0xff]
          %v809 = vld [vmem:[%s1 + $0x58] sm:$0xff]
          %v810 = vld [vmem:[%s1 + $0x60] sm:$0xff]
          %v811 = vld [vmem:[%s1 + $0x68] sm:$0xff]
          %v812 = vld [vmem:[%s1 + $0x70] sm:$0xff]
          %v813 = vld [vmem:[%s1 + $0x78] sm:$0xff]
          %v814 = vld [vmem:[%s2] sm:$0x1]
          %v816 = vperm.slane %v814, 0
          %818 = vmatpush.msra.mxu0 %v813
          %819 = vmatpush.msra.mxu0 %v812
          %820 = vmatpush.msra.mxu0 %v811
          %821 = vmatpush.msra.mxu0 %v810
          %822 = vmatpush.msra.mxu0 %v809
          %823 = vmatpush.msra.mxu0 %v808
          %824 = vmatpush.msra.mxu0 %v807
          %825 = vmatpush.msra.mxu0 %v806
          %826 = vmatpush.msra.mxu0 %v805
          %827 = vmatpush.msra.mxu0 %v804
          %828 = vmatpush.msra.mxu0 %v803
          %829 = vmatpush.msra.mxu0 %v802
          %830 = vmatpush.msra.mxu0 %v801
          %831 = vmatpush.msra.mxu0 %v800
          %832 = vmatpush.msra.mxu0 %v799
          %833 = vmatpush.msra.mxu0 %v798
          %834 = vmatmul.f32.gmra.mxu0 %v796
          %v835 = vpop.f32.mrf.mxu0
          %v836 = vadd.f32 %v816, %v835
          %837 = vmatmul.f32.gmra.mxu0 %v797
          %v838 = vpop.f32.mrf.mxu0
          %v839 = vadd.f32 %v816, %v838
          %840 = vdwg.mxu0
          %v841 = vmax.f32 %v836, 0.0
          %v842 = vmax.f32 %v839, 0.0
          %v843 = vld [vmem:[%s3] sm:$0xff]
          %v844 = vld [vmem:[%s3 + $0x8] sm:$0xff]
          %v845 = vld [vmem:[%s3 + $0x10] sm:$0xff]
          %v846 = vld [vmem:[%s3 + $0x18] sm:$0xff]
          %v847 = vld [vmem:[%s3 + $0x20] sm:$0xff]
          %v848 = vld [vmem:[%s3 + $0x28] sm:$0xff]
          %v849 = vld [vmem:[%s3 + $0x30] sm:$0xff]
          %v850 = vld [vmem:[%s3 + $0x38] sm:$0xff]
          %v851 = vld [vmem:[%s3 + $0x40] sm:$0xff]
          %v852 = vld [vmem:[%s3 + $0x48] sm:$0xff]
          %v853 = vld [vmem:[%s3 + $0x50] sm:$0xff]
          %v854 = vld [vmem:[%s3 + $0x58] sm:$0xff]
          %v855 = vld [vmem:[%s3 + $0x60] sm:$0xff]
          %v856 = vld [vmem:[%s3 + $0x68] sm:$0xff]
          %v857 = vld [vmem:[%s3 + $0x70] sm:$0xff]
          %v858 = vld [vmem:[%s3 + $0x78] sm:$0xff]
          %v859 = vld [vmem:[%s4] sm:$0x1]
          %v861 = vperm.slane %v859, 0
          %863 = vmatpush.msra.mxu0 %v858
          %864 = vmatpush.msra.mxu0 %v857
          %865 = vmatpush.msra.mxu0 %v856
          %866 = vmatpush.msra.mxu0 %v855
          %867 = vmatpush.msra.mxu0 %v854
          %868 = vmatpush.msra.mxu0 %v853
          %869 = vmatpush.msra.mxu0 %v852
          %870 = vmatpush.msra.mxu0 %v851
          %871 = vmatpush.msra.mxu0 %v850
          %872 = vmatpush.msra.mxu0 %v849
          %873 = vmatpush.msra.mxu0 %v848
          %874 = vmatpush.msra.mxu0 %v847
          %875 = vmatpush.msra.mxu0 %v846
          %876 = vmatpush.msra.mxu0 %v845
          %877 = vmatpush.msra.mxu0 %v844
          %878 = vmatpush.msra.mxu0 %v843
          %879 = vmatmul.f32.gmra.mxu0 %v841
          %v880 = vpop.f32.mrf.mxu0
          %v881 = vadd.f32 %v861, %v880
          %882 = vmatmul.f32.gmra.mxu0 %v842
          %v883 = vpop.f32.mrf.mxu0
          %v884 = vadd.f32 %v861, %v883
          %885 = vdwg.mxu0
          %886 = vst [vmem:[%s399] sm:$0xff] %v881
          %887 = vst [vmem:[%s399 + $0x8] sm:$0xff] %v884
        $region86: #{tpu_custom_call.1} parent=73 // pred_fallthru
          _
        %s888 = sand.u32 %s151, 1
        %s889 = scalar_lea.sflag [#allocation5], %s888
        %s890 = sand.u32 %s151, 1
        %s891 = smul.addr %s890, 16
        %s892 = scalar_lea.vmem [#allocation4], %s891
        // Predicated region
        $region87: #{tpu_custom_call.1} parent=73 // pred_check
          %p893 = pneg %p161
        $region88: #{tpu_custom_call.1} parent=73 // pred_check_branch
          %895 = sbr.rel (%p893) target = $region90
        $region89: #{tpu_custom_call.1} parent=73 // pred_region
          %s896 = smul.u32 2, %s23
          %898 = vsyncadd %s889, 0
          %s899 = smul.addr %s896, 8
          %s900 = scalar_lea.hbm %s5, %s899
          %s901 = sshll.u32 %s892, 4
          %s902 = int_to_ptr.vmem [resolvable:$true] %s901
          %s903 = sshll.u32 %s900, 4
          %s904 = int_to_ptr.hbm [resolvable:$true] %s903
          %909 = dma.vmem_to_hbm [thread:$0]  %s902, 256, %s904, %s889, 128, 128, 8
        $region90: #{tpu_custom_call.1} parent=73 // pred_fallthru
          _
      $region74: #{tpu_custom_call.1} parent=5 // pred_fallthru
        _
      %p910 = scmp.le.s32.totalorder 2, %s14
      // Predicated region
      $region91: #{tpu_custom_call.1} parent=5 // pred_check
        %p911 = pneg %p910
      $region92: #{tpu_custom_call.1} parent=5 // pred_check_branch
        %913 = sbr.rel (%p911) target = $region94
      $region93: #{tpu_custom_call.1} parent=5 // pred_region
        %s914 = ssub.s32 %s14, 2
        // Predicated region
        $region95: #{tpu_custom_call.1} parent=93 // pred_check
          %p915 = pneg %p167
        $region96: #{tpu_custom_call.1} parent=93 // pred_check_branch
          %917 = sbr.rel (%p915) target = $region98
        $region97: #{tpu_custom_call.1} parent=93 // pred_region
          %s918 = sand.u32 %s152, 1
          %s919 = scalar_lea.sflag [#allocation5], %s918
          %s920 = sand.u32 %s152, 1
          %s921 = smul.addr %s920, 16
          %s922 = scalar_lea.vmem [#allocation4], %s921
          %924 = dma.done %s919, 256
        $region98: #{tpu_custom_call.1} parent=93 // pred_fallthru
          _
      $region94: #{tpu_custom_call.1} parent=5 // pred_fallthru
        _
    $region6: #{tpu_custom_call.1} parent=1 // loop_footer
      %s18 = sadd.s32 1, %s14
    $region7: #{tpu_custom_call.1} parent=1 // loop_footer_branch
      %13 = sbr.rel target = $region3
    $region8: #{tpu_custom_call.1} parent=1 // loop_exit
      _
    %925 = vsyncpa [#allocation5], 1
    %s926 = scalar_lea.sflag [#allocation5], 1
    %927 = vsyncpa %s926, 1

// kernel: tpu_custom_call.1
$region0: #{tpu_custom_call.1}
  #allocation0 [shape = 'u32[]', space=smem, size = 0x4, offset = 0x4, fixed_abs, tag = 'smem constant byte address 0x4 - core index']
  #allocation1 [shape = 'u32[72,128]{1,0:T(1,128)}', space=vmem, size = 0x9000, scoped, tag = 'internal scratch']
  #allocation2 [shape = 'f32[16,128]{1,0:T(8,128)}', space=vmem, size = 0x2000, scoped, tag = 'scratch operand']
  %s0 = inlined_call_operand.vmem [shape: s32[32,32,1], index: 0, kind: input, shape index: {}]
  %s1 = inlined_call_operand.vmem [shape: f32[128,128], index: 1, kind: input, shape index: {}]
  %s2 = inlined_call_operand.vmem [shape: f32[1,128], index: 2, kind: input, shape index: {}]
  %s3 = inlined_call_operand.vmem [shape: f32[128,128], index: 3, kind: input, shape index: {}]
  %s4 = inlined_call_operand.vmem [shape: f32[1,128], index: 4, kind: input, shape index: {}]
  %s5 = inlined_call_operand.hbm [shape: f32[32,128], index: 5, kind: output, shape index: {}]
  %s6 = sld [smem:[#allocation0]]
  $region99: #{tpu_custom_call.1} parent=0
    _
  %s8 = ssub.s32 1, %s6
  %s9 = scalar_select 0, %s8, %s6
  $region1: #{tpu_custom_call.1} parent=0
    #allocation3 [shape = 'u8[262144]{0}', space=vmem, size = 0x40000, scoped, tag = 'input window, operand 0']
    #allocation4 [shape = 'u8[16384]{0}', space=vmem, size = 0x4000, scoped, tag = 'output window, operand 0']
    #allocation5 [shape = 's32[2]{0}', space=sflag, size = 0x8, scoped, tag = 'scoped memory for tpu_custom_call.1']
    %10 = vsyncpa [#allocation5], 0
    %s11 = scalar_lea.sflag [#allocation5], 1
    %12 = vsyncpa %s11, 0
    loop: start=0, step=1, limit=6
    $region2: #{tpu_custom_call.1} parent=1 // loop_pre_header
      _
    $region3: #{tpu_custom_call.1} parent=1 // loop_header
      %s14 = sphi 0, %s18
      %p15 = scmp.ge.s32.totalorder %s14, 6
      %s21 = sphi 0, %s33
      %s22 = sphi 0, %s29
      %s23 = sphi 0, %s21
      %s24 = sphi 0, %s22
      %s25 = sphi 0, %s23
      %s26 = sphi 0, %s24
      %s38 = sphi 0, %s40
      %s41 = sphi 0, %s38
      %s42 = sphi 0, %s41
      %s58 = sphi 0, %s42
      %s62 = sphi 0, %s62
      %s64 = sphi 0, %s62
      %s65 = sphi 0, %s64
      %s79 = sphi 0, %s65
      %s83 = sphi 0, %s83
      %s85 = sphi 0, %s83
      %s86 = sphi 0, %s85
      %s100 = sphi 0, %s86
      %s104 = sphi 0, %s104
      %s106 = sphi 0, %s104
      %s107 = sphi 0, %s106
      %s121 = sphi 0, %s107
      %s125 = sphi 0, %s125
      %s127 = sphi 0, %s125
      %s128 = sphi 0, %s127
      %s142 = sphi 0, %s128
      %s148 = sphi 0, %s150
      %s151 = sphi 0, %s148
      %s152 = sphi 0, %s151
      %s168 = sphi 0, %s152
    $region4: #{tpu_custom_call.1} parent=1 // loop_header_branch
      %17 = sbr.rel (%p15) target = $region8
    $region5: #{tpu_custom_call.1} parent=1 // loop_body
      %s19 = ssub.s32 %s14, 1
      %s20 = ssub.s32 %s14, 2
      %s27 = sadd.s32 1, %s22
      %p28 = scmp.ge.s32.totalorder %s27, 2
      %s29 = scalar_select %p28, 0, %s27
      %s30 = sadd.s32 1, %s21
      %s31 = scalar_select %p28, %s30, %s21
      %p32 = scmp.ge.s32.totalorder %s31, 2
      %s33 = scalar_select %p32, 0, %s31
      %s34 = ssub.s32 %s21, %s33
      %s35 = ssub.s32 %s22, %s29
      %s36 = sor.u32 %s34, %s35
      %p37 = scmp.eq.s32.totalorder %s36, 0
      %s39 = sadd.s32 %s38, 1
      %s40 = scalar_select %p37, %s38, %s39
      %p43 = pneg %p37
      %p44 = scmp.eq.s32.totalorder %s14, 3
      %p45 = por %p43, %p44
      %p46 = scmp.ne.s32.totalorder %s38, %s41
      %p47 = scmp.eq.s32.totalorder %s14, 0
      %p48 = por %p46, %p47
      %p49 = scmp.ne.s32.totalorder %s38, %s41
      %p50 = scmp.eq.s32.totalorder %s19, 3
      %p51 = por %p49, %p50
      %p52 = scmp.ne.s32.totalorder %s41, %s42
      %p53 = scmp.eq.s32.totalorder %s19, 0
      %p54 = por %p52, %p53
      %p55 = scmp.ne.s32.totalorder %s41, %s42
      %p56 = scmp.eq.s32.totalorder %s20, 3
      %p57 = por %p55, %p56
      %p59 = scmp.ne.s32.totalorder %s42, %s58
      %p60 = scmp.eq.s32.totalorder %s20, 0
      %p61 = por %p59, %p60
      %s63 = sadd.s32 %s62, 1
      %p66 = scmp.eq.s32.totalorder %s14, 3
      %p67 = scmp.ne.s32.totalorder %s62, %s64
      %p68 = scmp.eq.s32.totalorder %s14, 0
      %p69 = por %p67, %p68
      %p70 = scmp.ne.s32.totalorder %s62, %s64
      %p71 = scmp.eq.s32.totalorder %s19, 3
      %p72 = por %p70, %p71
      %p73 = scmp.ne.s32.totalorder %s64, %s65
      %p74 = scmp.eq.s32.totalorder %s19, 0
      %p75 = por %p73, %p74
      %p76 = scmp.ne.s32.totalorder %s64, %s65
      %p77 = scmp.eq.s32.totalorder %s20, 3
      %p78 = por %p76, %p77
      %p80 = scmp.ne.s32.totalorder %s65, %s79
      %p81 = scmp.eq.s32.totalorder %s20, 0
      %p82 = por %p80, %p81
      %s84 = sadd.s32 %s83, 1
      %p87 = scmp.eq.s32.totalorder %s14, 3
      %p88 = scmp.ne.s32.totalorder %s83, %s85
      %p89 = scmp.eq.s32.totalorder %s14, 0
      %p90 = por %p88, %p89
      %p91 = scmp.ne.s32.totalorder %s83, %s85
      %p92 = scmp.eq.s32.totalorder %s19, 3
      %p93 = por %p91, %p92
      %p94 = scmp.ne.s32.totalorder %s85, %s86
      %p95 = scmp.eq.s32.totalorder %s19, 0
      %p96 = por %p94, %p95
      %p97 = scmp.ne.s32.totalorder %s85, %s86
      %p98 = scmp.eq.s32.totalorder %s20, 3
      %p99 = por %p97, %p98
      %p101 = scmp.ne.s32.totalorder %s86, %s100
      %p102 = scmp.eq.s32.totalorder %s20, 0
      %p103 = por %p101, %p102
      %s105 = sadd.s32 %s104, 1
      %p108 = scmp.eq.s32.totalorder %s14, 3
      %p109 = scmp.ne.s32.totalorder %s104, %s106
      %p110 = scmp.eq.s32.totalorder %s14, 0
      %p111 = por %p109, %p110
      %p112 = scmp.ne.s32.totalorder %s104, %s106
      %p113 = scmp.eq.s32.totalorder %s19, 3
      %p114 = por %p112, %p113
      %p115 = scmp.ne.s32.totalorder %s106, %s107
      %p116 = scmp.eq.s32.totalorder %s19, 0
      %p117 = por %p115, %p116
      %p118 = scmp.ne.s32.totalorder %s106, %s107
      %p119 = scmp.eq.s32.totalorder %s20, 3
      %p120 = por %p118, %p119
      %p122 = scmp.ne.s32.totalorder %s107, %s121
      %p123 = scmp.eq.s32.totalorder %s20, 0
      %p124 = por %p122, %p123
      %s126 = sadd.s32 %s125, 1
      %p129 = scmp.eq.s32.totalorder %s14, 3
      %p130 = scmp.ne.s32.totalorder %s125, %s127
      %p131 = scmp.eq.s32.totalorder %s14, 0
      %p132 = por %p130, %p131
      %p133 = scmp.ne.s32.totalorder %s125, %s127
      %p134 = scmp.eq.s32.totalorder %s19, 3
      %p135 = por %p133, %p134
      %p136 = scmp.ne.s32.totalorder %s127, %s128
      %p137 = scmp.eq.s32.totalorder %s19, 0
      %p138 = por %p136, %p137
      %p139 = scmp.ne.s32.totalorder %s127, %s128
      %p140 = scmp.eq.s32.totalorder %s20, 3
      %p141 = por %p139, %p140
      %p143 = scmp.ne.s32.totalorder %s128, %s142
      %p144 = scmp.eq.s32.totalorder %s20, 0
      %p145 = por %p143, %p144
      %s146 = ssub.s32 %s21, %s33
      %p147 = scmp.eq.s32.totalorder %s146, 0
      %s149 = sadd.s32 %s148, 1
      %s150 = scalar_select %p147, %s148, %s149
      %p153 = pneg %p147
      %p154 = scmp.eq.s32.totalorder %s14, 3
      %p155 = por %p153, %p154
      %p156 = scmp.ne.s32.totalorder %s148, %s151
      %p157 = scmp.eq.s32.totalorder %s14, 0
      %p158 = por %p156, %p157
      %p159 = scmp.ne.s32.totalorder %s148, %s151
      %p160 = scmp.eq.s32.totalorder %s19, 3
      %p161 = por %p159, %p160
      %p162 = scmp.ne.s32.totalorder %s151, %s152
      %p163 = scmp.eq.s32.totalorder %s19, 0
      %p164 = por %p162, %p163
      %p165 = scmp.ne.s32.totalorder %s151, %s152
      %p166 = scmp.eq.s32.totalorder %s20, 3
      %p167 = por %p165, %p166
      %p169 = scmp.ne.s32.totalorder %s152, %s168
      %p170 = scmp.eq.s32.totalorder %s20, 0
      %p171 = por %p169, %p170
      %p172 = scmp.le.s32.totalorder 1, %s14
      %p173 = scmp.lt.s32.totalorder %s14, 5
      %p174 = pnand %p172, %p173
      %p175 = pneg %p174
      // Predicated region
      $region9: #{tpu_custom_call.1} parent=5 // pred_check
        _
      $region10: #{tpu_custom_call.1} parent=5 // pred_check_branch
        %177 = sbr.rel (%p174) target = $region12
      $region11: #{tpu_custom_call.1} parent=5 // pred_region
        %s178 = ssub.s32 %s14, 1
        // Predicated region
        $region13: #{tpu_custom_call.1} parent=11 // pred_check
          %p179 = pneg %p75
        $region14: #{tpu_custom_call.1} parent=11 // pred_check_branch
          %181 = sbr.rel (%p179) target = $region16
        $region15: #{tpu_custom_call.1} parent=11 // pred_region
          _
        $region16: #{tpu_custom_call.1} parent=11 // pred_fallthru
          _
        // Predicated region
        $region17: #{tpu_custom_call.1} parent=11 // pred_check
          %p182 = pneg %p96
        $region18: #{tpu_custom_call.1} parent=11 // pred_check_branch
          %184 = sbr.rel (%p182) target = $region20
        $region19: #{tpu_custom_call.1} parent=11 // pred_region
          _
        $region20: #{tpu_custom_call.1} parent=11 // pred_fallthru
          _
        // Predicated region
        $region21: #{tpu_custom_call.1} parent=11 // pred_check
          %p185 = pneg %p117
        $region22: #{tpu_custom_call.1} parent=11 // pred_check_branch
          %187 = sbr.rel (%p185) target = $region24
        $region23: #{tpu_custom_call.1} parent=11 // pred_region
          _
        $region24: #{tpu_custom_call.1} parent=11 // pred_fallthru
          _
        // Predicated region
        $region25: #{tpu_custom_call.1} parent=11 // pred_check
          %p188 = pneg %p138
        $region26: #{tpu_custom_call.1} parent=11 // pred_check_branch
          %190 = sbr.rel (%p188) target = $region28
        $region27: #{tpu_custom_call.1} parent=11 // pred_region
          _
        $region28: #{tpu_custom_call.1} parent=11 // pred_fallthru
          _
      $region12: #{tpu_custom_call.1} parent=5 // pred_fallthru
        _
      %p191 = scmp.lt.s32.totalorder %s14, 4
      // Predicated region
      $region29: #{tpu_custom_call.1} parent=5 // pred_check
        %p192 = pneg %p191
      $region30: #{tpu_custom_call.1} parent=5 // pred_check_branch
        %194 = sbr.rel (%p192) target = $region32
      $region31: #{tpu_custom_call.1} parent=5 // pred_region
        // Predicated region
        $region33: #{tpu_custom_call.1} parent=31 // pred_check
          %p195 = pneg %p48
        $region34: #{tpu_custom_call.1} parent=31 // pred_check_branch
          %197 = sbr.rel (%p195) target = $region36
        $region35: #{tpu_custom_call.1} parent=31 // pred_region
          %s198 = sand.u32 %s38, 1
          %s199 = sand.u32 %s38, 1
          %s200 = smul.addr %s199, 256
          %s201 = scalar_lea.vmem [#allocation3], %s200
          %s202 = smul.u32 16, %s21
          %s203 = smul.u32 2, %s22
          %s204 = smul.addr %s202, 4
          %s205 = sadd.s32 %s203, %s204
          %s206 = smul.addr %s205, 8
          %s207 = scalar_lea.vmem %s0, %s206
          // Predicated region
          $region37: #{tpu_custom_call.1} parent=35 // pred_check
            _
          $region38: #{tpu_custom_call.1} parent=35 // pred_check_branch
            %209 = sbr.rel (0) target = $region40
          $region39: #{tpu_custom_call.1} parent=35 // pred_region
            // Predicated region
            $region41: #{tpu_custom_call.1} parent=39 // pred_check
              _
            $region42: #{tpu_custom_call.1} parent=39 // pred_check_branch
              %211 = sbr.rel (0) target = $region44
            $region43: #{tpu_custom_call.1} parent=39 // pred_region
              // Predicated region
              $region56: #{tpu_custom_call.1} parent=43 // pred_check
                _
              $region57: #{tpu_custom_call.1} parent=43 // pred_check_branch
                %289 = sbr.rel (0) target = $region59
              $region58: #{tpu_custom_call.1} parent=43 // pred_region
                loop: start=0, step=1, limit=1
                $region60: #{tpu_custom_call.1} parent=58 // loop_pre_header
                  _
                $region61: #{tpu_custom_call.1} parent=58 // loop_header
                  %s291 = sphi 0, %s295
                  %p292 = scmp.ge.s32.totalorder %s291, 1
                  %s296 = sphi %s207, %s207
                  %s297 = sphi %s201, %s201
                $region62: #{tpu_custom_call.1} parent=58 // loop_header_branch
                  %294 = sbr.rel (%p292) target = $region66
                $region63: #{tpu_custom_call.1} parent=58 // loop_body
                  %v298 = vld [vmem:[%s296] sm:$0xff]
                  %299 = vst [vmem:[%s297] sm:$0xff] %v298
                  %v300 = vld [vmem:[%s296 + $0x8] sm:$0xff]
                  %301 = vst [vmem:[%s297 + $0x8] sm:$0xff] %v300
                  %v302 = vld [vmem:[%s296 + $0x20] sm:$0xff]
                  %303 = vst [vmem:[%s297 + $0x10] sm:$0xff] %v302
                  %v304 = vld [vmem:[%s296 + $0x28] sm:$0xff]
                  %305 = vst [vmem:[%s297 + $0x18] sm:$0xff] %v304
                  %v306 = vld [vmem:[%s296 + $0x40] sm:$0xff]
                  %307 = vst [vmem:[%s297 + $0x20] sm:$0xff] %v306
                  %v308 = vld [vmem:[%s296 + $0x48] sm:$0xff]
                  %309 = vst [vmem:[%s297 + $0x28] sm:$0xff] %v308
                  %v310 = vld [vmem:[%s296 + $0x60] sm:$0xff]
                  %311 = vst [vmem:[%s297 + $0x30] sm:$0xff] %v310
                  %v312 = vld [vmem:[%s296 + $0x68] sm:$0xff]
                  %313 = vst [vmem:[%s297 + $0x38] sm:$0xff] %v312
                  %v314 = vld [vmem:[%s296 + $0x80] sm:$0xff]
                  %315 = vst [vmem:[%s297 + $0x40] sm:$0xff] %v314
                  %v316 = vld [vmem:[%s296 + $0x88] sm:$0xff]
                  %317 = vst [vmem:[%s297 + $0x48] sm:$0xff] %v316
                  %v318 = vld [vmem:[%s296 + $0xa0] sm:$0xff]
                  %319 = vst [vmem:[%s297 + $0x50] sm:$0xff] %v318
                  %v320 = vld [vmem:[%s296 + $0xa8] sm:$0xff]
                  %321 = vst [vmem:[%s297 + $0x58] sm:$0xff] %v320
                  %v322 = vld [vmem:[%s296 + $0xc0] sm:$0xff]
                  %323 = vst [vmem:[%s297 + $0x60] sm:$0xff] %v322
                  %v324 = vld [vmem:[%s296 + $0xc8] sm:$0xff]
                  %325 = vst [vmem:[%s297 + $0x68] sm:$0xff] %v324
                  %v326 = vld [vmem:[%s296 + $0xe0] sm:$0xff]
                  %327 = vst [vmem:[%s297 + $0x70] sm:$0xff] %v326
                  %v328 = vld [vmem:[%s296 + $0xe8] sm:$0xff]
                  %329 = vst [vmem:[%s297 + $0x78] sm:$0xff] %v328
                  %v330 = vld [vmem:[%s296 + $0x100] sm:$0xff]
                  %331 = vst [vmem:[%s297 + $0x80] sm:$0xff] %v330
                  %v332 = vld [vmem:[%s296 + $0x108] sm:$0xff]
                  %333 = vst [vmem:[%s297 + $0x88] sm:$0xff] %v332
                  %v334 = vld [vmem:[%s296 + $0x120] sm:$0xff]
                  %335 = vst [vmem:[%s297 + $0x90] sm:$0xff] %v334
                  %v336 = vld [vmem:[%s296 + $0x128] sm:$0xff]
                  %337 = vst [vmem:[%s297 + $0x98] sm:$0xff] %v336
                  %v338 = vld [vmem:[%s296 + $0x140] sm:$0xff]
                  %339 = vst [vmem:[%s297 + $0xa0] sm:$0xff] %v338
                  %v340 = vld [vmem:[%s296 + $0x148] sm:$0xff]
                  %341 = vst [vmem:[%s297 + $0xa8] sm:$0xff] %v340
                  %v342 = vld [vmem:[%s296 + $0x160] sm:$0xff]
                  %343 = vst [vmem:[%s297 + $0xb0] sm:$0xff] %v342
                  %v344 = vld [vmem:[%s296 + $0x168] sm:$0xff]
                  %345 = vst [vmem:[%s297 + $0xb8] sm:$0xff] %v344
                  %v346 = vld [vmem:[%s296 + $0x180] sm:$0xff]
                  %347 = vst [vmem:[%s297 + $0xc0] sm:$0xff] %v346
                  %v348 = vld [vmem:[%s296 + $0x188] sm:$0xff]
                  %349 = vst [vmem:[%s297 + $0xc8] sm:$0xff] %v348
                  %v350 = vld [vmem:[%s296 + $0x1a0] sm:$0xff]
                  %351 = vst [vmem:[%s297 + $0xd0] sm:$0xff] %v350
                  %v352 = vld [vmem:[%s296 + $0x1a8] sm:$0xff]
                  %353 = vst [vmem:[%s297 + $0xd8] sm:$0xff] %v352
                  %v354 = vld [vmem:[%s296 + $0x1c0] sm:$0xff]
                  %355 = vst [vmem:[%s297 + $0xe0] sm:$0xff] %v354
                  %v356 = vld [vmem:[%s296 + $0x1c8] sm:$0xff]
                  %357 = vst [vmem:[%s297 + $0xe8] sm:$0xff] %v356
                  %v358 = vld [vmem:[%s296 + $0x1e0] sm:$0xff]
                  %359 = vst [vmem:[%s297 + $0xf0] sm:$0xff] %v358
                  %v360 = vld [vmem:[%s296 + $0x1e8] sm:$0xff]
                  %361 = vst [vmem:[%s297 + $0xf8] sm:$0xff] %v360
                $region64: #{tpu_custom_call.1} parent=58 // loop_footer
                  %s295 = sadd.s32 1, %s291
                $region65: #{tpu_custom_call.1} parent=58 // loop_footer_branch
                  %290 = sbr.rel target = $region61
                $region66: #{tpu_custom_call.1} parent=58 // loop_exit
                  _
              $region59: #{tpu_custom_call.1} parent=43 // pred_fallthru
                _
              // Predicated region
              $region67: #{tpu_custom_call.1} parent=43 // pred_check
                _
              $region68: #{tpu_custom_call.1} parent=43 // pred_check_branch
                %363 = sbr.rel target = $region70
              $region69: #{tpu_custom_call.1} parent=43 // pred_region
                _
              $region70: #{tpu_custom_call.1} parent=43 // pred_fallthru
                _
            $region44: #{tpu_custom_call.1} parent=39 // pred_fallthru
              _
            // Predicated region
            $region45: #{tpu_custom_call.1} parent=39 // pred_check
              _
            $region46: #{tpu_custom_call.1} parent=39 // pred_check_branch
              %213 = sbr.rel target = $region48
            $region47: #{tpu_custom_call.1} parent=39 // pred_region
              %s215 = ssub.s32 256, 1
              loop: start=0, step=1, limit=1
              $region49: #{tpu_custom_call.1} parent=47 // loop_pre_header
                _
              $region50: #{tpu_custom_call.1} parent=47 // loop_header
                %s217 = sphi 0, %s221
                %p218 = scmp.ge.s32.totalorder %s217, 1
                %s222 = sphi %s207, %s207
                %s223 = sphi %s201, %s201
              $region51: #{tpu_custom_call.1} parent=47 // loop_header_branch
                %220 = sbr.rel (%p218) target = $region55
              $region52: #{tpu_custom_call.1} parent=47 // loop_body
                %v224 = vld [vmem:[%s222] sm:%s215]
                %225 = vst [vmem:[%s223] sm:%s215] %v224
                %v226 = vld [vmem:[%s222 + $0x8] sm:%s215]
                %227 = vst [vmem:[%s223 + $0x8] sm:%s215] %v226
                %v228 = vld [vmem:[%s222 + $0x20] sm:%s215]
                %229 = vst [vmem:[%s223 + $0x10] sm:%s215] %v228
                %v230 = vld [vmem:[%s222 + $0x28] sm:%s215]
                %231 = vst [vmem:[%s223 + $0x18] sm:%s215] %v230
                %v232 = vld [vmem:[%s222 + $0x40] sm:%s215]
                %233 = vst [vmem:[%s223 + $0x20] sm:%s215] %v232
                %v234 = vld [vmem:[%s222 + $0x48] sm:%s215]
                %235 = vst [vmem:[%s223 + $0x28] sm:%s215] %v234
                %v236 = vld [vmem:[%s222 + $0x60] sm:%s215]
                %237 = vst [vmem:[%s223 + $0x30] sm:%s215] %v236
                %v238 = vld [vmem:[%s222 + $0x68] sm:%s215]
                %239 = vst [vmem:[%s223 + $0x38] sm:%s215] %v238
                %v240 = vld [vmem:[%s222 + $0x80] sm:%s215]
                %241 = vst [vmem:[%s223 + $0x40] sm:%s215] %v240
                %v242 = vld [vmem:[%s222 + $0x88] sm:%s215]
                %243 = vst [vmem:[%s223 + $0x48] sm:%s215] %v242
                %v244 = vld [vmem:[%s222 + $0xa0] sm:%s215]
                %245 = vst [vmem:[%s223 + $0x50] sm:%s215] %v244
                %v246 = vld [vmem:[%s222 + $0xa8] sm:%s215]
                %247 = vst [vmem:[%s223 + $0x58] sm:%s215] %v246
                %v248 = vld [vmem:[%s222 + $0xc0] sm:%s215]
                %249 = vst [vmem:[%s223 + $0x60] sm:%s215] %v248
                %v250 = vld [vmem:[%s222 + $0xc8] sm:%s215]
                %251 = vst [vmem:[%s223 + $0x68] sm:%s215] %v250
                %v252 = vld [vmem:[%s222 + $0xe0] sm:%s215]
                %253 = vst [vmem:[%s223 + $0x70] sm:%s215] %v252
                %v254 = vld [vmem:[%s222 + $0xe8] sm:%s215]
                %255 = vst [vmem:[%s223 + $0x78] sm:%s215] %v254
                %v256 = vld [vmem:[%s222 + $0x100] sm:%s215]
                %257 = vst [vmem:[%s223 + $0x80] sm:%s215] %v256
                %v258 = vld [vmem:[%s222 + $0x108] sm:%s215]
                %259 = vst [vmem:[%s223 + $0x88] sm:%s215] %v258
                %v260 = vld [vmem:[%s222 + $0x120] sm:%s215]
                %261 = vst [vmem:[%s223 + $0x90] sm:%s215] %v260
                %v262 = vld [vmem:[%s222 + $0x128] sm:%s215]
                %263 = vst [vmem:[%s223 + $0x98] sm:%s215] %v262
                %v264 = vld [vmem:[%s222 + $0x140] sm:%s215]
                %265 = vst [vmem:[%s223 + $0xa0] sm:%s215] %v264
                %v266 = vld [vmem:[%s222 + $0x148] sm:%s215]
                %267 = vst [vmem:[%s223 + $0xa8] sm:%s215] %v266
                %v268 = vld [vmem:[%s222 + $0x160] sm:%s215]
                %269 = vst [vmem:[%s223 + $0xb0] sm:%s215] %v268
                %v270 = vld [vmem:[%s222 + $0x168] sm:%s215]
                %271 = vst [vmem:[%s223 + $0xb8] sm:%s215] %v270
                %v272 = vld [vmem:[%s222 + $0x180] sm:%s215]
                %273 = vst [vmem:[%s223 + $0xc0] sm:%s215] %v272
                %v274 = vld [vmem:[%s222 + $0x188] sm:%s215]
                %275 = vst [vmem:[%s223 + $0xc8] sm:%s215] %v274
                %v276 = vld [vmem:[%s222 + $0x1a0] sm:%s215]
                %277 = vst [vmem:[%s223 + $0xd0] sm:%s215] %v276
                %v278 = vld [vmem:[%s222 + $0x1a8] sm:%s215]
                %279 = vst [vmem:[%s223 + $0xd8] sm:%s215] %v278
                %v280 = vld [vmem:[%s222 + $0x1c0] sm:%s215]
                %281 = vst [vmem:[%s223 + $0xe0] sm:%s215] %v280
                %v282 = vld [vmem:[%s222 + $0x1c8] sm:%s215]
                %283 = vst [vmem:[%s223 + $0xe8] sm:%s215] %v282
                %v284 = vld [vmem:[%s222 + $0x1e0] sm:%s215]
                %285 = vst [vmem:[%s223 + $0xf0] sm:%s215] %v284
                %v286 = vld [vmem:[%s222 + $0x1e8] sm:%s215]
                %287 = vst [vmem:[%s223 + $0xf8] sm:%s215] %v286
              $region53: #{tpu_custom_call.1} parent=47 // loop_footer
                %s221 = sadd.s32 1, %s217
              $region54: #{tpu_custom_call.1} parent=47 // loop_footer_branch
                %216 = sbr.rel target = $region50
              $region55: #{tpu_custom_call.1} parent=47 // loop_exit
                _
            $region48: #{tpu_custom_call.1} parent=39 // pred_fallthru
              _
          $region40: #{tpu_custom_call.1} parent=35 // pred_fallthru
            _
          %364 = vnop
        $region36: #{tpu_custom_call.1} parent=31 // pred_fallthru
          _
      $region32: #{tpu_custom_call.1} parent=5 // pred_fallthru
        _
      %p365 = scmp.le.s32.totalorder 1, %s14
      %p366 = scmp.lt.s32.totalorder %s14, 5
      %p367 = pnand %p365, %p366
      %p368 = pneg %p367
      // Predicated region
      $region71: #{tpu_custom_call.1} parent=5 // pred_check
        _
      $region72: #{tpu_custom_call.1} parent=5 // pred_check_branch
        %370 = sbr.rel (%p367) target = $region74
      $region73: #{tpu_custom_call.1} parent=5 // pred_region
        %s371 = ssub.s32 %s14, 1
        %s372 = sand.u32 %s41, 1
        %s373 = sand.u32 %s41, 1
        %s374 = smul.addr %s373, 256
        %s375 = scalar_lea.vmem [#allocation3], %s374
        // Predicated region
        $region75: #{tpu_custom_call.1} parent=73 // pred_check
          %p376 = pneg %p54
        $region76: #{tpu_custom_call.1} parent=73 // pred_check_branch
          %378 = sbr.rel (%p376) target = $region78
        $region77: #{tpu_custom_call.1} parent=73 // pred_region
          _
        $region78: #{tpu_custom_call.1} parent=73 // pred_fallthru
          _
        %s379 = sand.u32 %s41, 1
        %s380 = sand.u32 %s41, 1
        %s381 = smul.addr %s380, 256
        %s382 = scalar_lea.vmem [#allocation3], %s381
        %p383 = pneg %p54
        %p384 = pneg %p51
        %p385 = pneg %p75
        %p386 = pneg %p72
        %p387 = pneg %p96
        %p388 = pneg %p93
        %p389 = pneg %p117
        %p390 = pneg %p114
        %p391 = pneg %p138
        %p392 = pneg %p135
        %p393 = pneg %p164
        %p394 = pneg %p161
        %s395 = sand.u32 %s151, 1
        %s396 = scalar_lea.sflag [#allocation5], %s395
        %s397 = sand.u32 %s151, 1
        %s398 = smul.addr %s397, 16
        %s399 = scalar_lea.vmem [#allocation4], %s398
        %s400 = smul.u32 16, %s23
        %s401 = smul.u32 2, %s24
        %s402 = smul.u32 2, %s23
        %p403 = scmp.eq.s32.totalorder %s24, 0
        // Predicated region
        $region79: #{tpu_custom_call.1} parent=73 // pred_check
          %p404 = pneg %p403
        $region80: #{tpu_custom_call.1} parent=73 // pred_check_branch
          %406 = sbr.rel (%p404) target = $region82
        $region81: #{tpu_custom_call.1} parent=73 // pred_region
          %407 = vst [vmem:[#allocation2] sm:$0xff] 0.0
          %408 = vst [vmem:[#allocation2 + $0x8] sm:$0xff] 0.0
        $region82: #{tpu_custom_call.1} parent=73 // pred_fallthru
          _
        %v409 = vld [vmem:[%s375] sm:$0xff]
        %v410 = vld [vmem:[%s375 + $0x8] sm:$0xff]
        %v411 = vld [vmem:[%s375 + $0x10] sm:$0xff]
        %v412 = vld [vmem:[%s375 + $0x18] sm:$0xff]
        %v413 = vld [vmem:[%s375 + $0x20] sm:$0xff]
        %v414 = vld [vmem:[%s375 + $0x28] sm:$0xff]
        %v415 = vld [vmem:[%s375 + $0x30] sm:$0xff]
        %v416 = vld [vmem:[%s375 + $0x38] sm:$0xff]
        %v417 = vld [vmem:[%s375 + $0x40] sm:$0xff]
        %v418 = vld [vmem:[%s375 + $0x48] sm:$0xff]
        %v419 = vld [vmem:[%s375 + $0x50] sm:$0xff]
        %v420 = vld [vmem:[%s375 + $0x58] sm:$0xff]
        %v421 = vld [vmem:[%s375 + $0x60] sm:$0xff]
        %v422 = vld [vmem:[%s375 + $0x68] sm:$0xff]
        %v423 = vld [vmem:[%s375 + $0x70] sm:$0xff]
        %v424 = vld [vmem:[%s375 + $0x78] sm:$0xff]
        %v425 = vld [vmem:[%s375 + $0x80] sm:$0xff]
        %v426 = vld [vmem:[%s375 + $0x88] sm:$0xff]
        %v427 = vld [vmem:[%s375 + $0x90] sm:$0xff]
        %v428 = vld [vmem:[%s375 + $0x98] sm:$0xff]
        %v429 = vld [vmem:[%s375 + $0xa0] sm:$0xff]
        %v430 = vld [vmem:[%s375 + $0xa8] sm:$0xff]
        %v431 = vld [vmem:[%s375 + $0xb0] sm:$0xff]
        %v432 = vld [vmem:[%s375 + $0xb8] sm:$0xff]
        %v433 = vld [vmem:[%s375 + $0xc0] sm:$0xff]
        %v434 = vld [vmem:[%s375 + $0xc8] sm:$0xff]
        %v435 = vld [vmem:[%s375 + $0xd0] sm:$0xff]
        %v436 = vld [vmem:[%s375 + $0xd8] sm:$0xff]
        %v437 = vld [vmem:[%s375 + $0xe0] sm:$0xff]
        %v438 = vld [vmem:[%s375 + $0xe8] sm:$0xff]
        %v439 = vld [vmem:[%s375 + $0xf0] sm:$0xff]
        %v440 = vld [vmem:[%s375 + $0xf8] sm:$0xff]
        %v441 = vlaneseq
        %v442 = vand.u32 %v441, 127
        %443 = vset.pattern.permute.xlu0 0
        %444 = vperm.xlu0 %443, %v409
        %v445 = vpop.permute.xlu0 %444
        %446 = vset.pattern.permute.xlu0 0
        %447 = vperm.xlu0 %446, %v410
        %v448 = vpop.permute.xlu0 %447
        %449 = vset.pattern.permute.xlu0 0
        %450 = vperm.xlu0 %449, %v411
        %v451 = vpop.permute.xlu0 %450
        %452 = vset.pattern.permute.xlu0 0
        %453 = vperm.xlu0 %452, %v412
        %v454 = vpop.permute.xlu0 %453
        %455 = vset.pattern.permute.xlu0 0
        %456 = vperm.xlu0 %455, %v413
        %v457 = vpop.permute.xlu0 %456
        %458 = vset.pattern.permute.xlu0 0
        %459 = vperm.xlu0 %458, %v414
        %v460 = vpop.permute.xlu0 %459
        %461 = vset.pattern.permute.xlu0 0
        %462 = vperm.xlu0 %461, %v415
        %v463 = vpop.permute.xlu0 %462
        %464 = vset.pattern.permute.xlu0 0
        %465 = vperm.xlu0 %464, %v416
        %v466 = vpop.permute.xlu0 %465
        %467 = vset.pattern.permute.xlu0 0
        %468 = vperm.xlu0 %467, %v417
        %v469 = vpop.permute.xlu0 %468
        %470 = vset.pattern.permute.xlu0 0
        %471 = vperm.xlu0 %470, %v418
        %v472 = vpop.permute.xlu0 %471
        %473 = vset.pattern.permute.xlu0 0
        %474 = vperm.xlu0 %473, %v419
        %v475 = vpop.permute.xlu0 %474
        %476 = vset.pattern.permute.xlu0 0
        %477 = vperm.xlu0 %476, %v420
        %v478 = vpop.permute.xlu0 %477
        %479 = vset.pattern.permute.xlu0 0
        %480 = vperm.xlu0 %479, %v421
        %v481 = vpop.permute.xlu0 %480
        %482 = vset.pattern.permute.xlu0 0
        %483 = vperm.xlu0 %482, %v422
        %v484 = vpop.permute.xlu0 %483
        %485 = vset.pattern.permute.xlu0 0
        %486 = vperm.xlu0 %485, %v423
        %v487 = vpop.permute.xlu0 %486
        %488 = vset.pattern.permute.xlu0 0
        %489 = vperm.xlu0 %488, %v424
        %v490 = vpop.permute.xlu0 %489
        %491 = vset.pattern.permute.xlu0 0
        %492 = vperm.xlu0 %491, %v425
        %v493 = vpop.permute.xlu0 %492
        %494 = vset.pattern.permute.xlu0 0
        %495 = vperm.xlu0 %494, %v426
        %v496 = vpop.permute.xlu0 %495
        %497 = vset.pattern.permute.xlu0 0
        %498 = vperm.xlu0 %497, %v427
        %v499 = vpop.permute.xlu0 %498
        %500 = vset.pattern.permute.xlu0 0
        %501 = vperm.xlu0 %500, %v428
        %v502 = vpop.permute.xlu0 %501
        %503 = vset.pattern.permute.xlu0 0
        %504 = vperm.xlu0 %503, %v429
        %v505 = vpop.permute.xlu0 %504
        %506 = vset.pattern.permute.xlu0 0
        %507 = vperm.xlu0 %506, %v430
        %v508 = vpop.permute.xlu0 %507
        %509 = vset.pattern.permute.xlu0 0
        %510 = vperm.xlu0 %509, %v431
        %v511 = vpop.permute.xlu0 %510
        %512 = vset.pattern.permute.xlu0 0
        %513 = vperm.xlu0 %512, %v432
        %v514 = vpop.permute.xlu0 %513
        %515 = vset.pattern.permute.xlu0 0
        %516 = vperm.xlu0 %515, %v433
        %v517 = vpop.permute.xlu0 %516
        %518 = vset.pattern.permute.xlu0 0
        %519 = vperm.xlu0 %518, %v434
        %v520 = vpop.permute.xlu0 %519
        %521 = vset.pattern.permute.xlu0 0
        %522 = vperm.xlu0 %521, %v435
        %v523 = vpop.permute.xlu0 %522
        %524 = vset.pattern.permute.xlu0 0
        %525 = vperm.xlu0 %524, %v436
        %v526 = vpop.permute.xlu0 %525
        %527 = vset.pattern.permute.xlu0 0
        %528 = vperm.xlu0 %527, %v437
        %v529 = vpop.permute.xlu0 %528
        %530 = vset.pattern.permute.xlu0 0
        %531 = vperm.xlu0 %530, %v438
        %v532 = vpop.permute.xlu0 %531
        %533 = vset.pattern.permute.xlu0 0
        %534 = vperm.xlu0 %533, %v439
        %v535 = vpop.permute.xlu0 %534
        %536 = vset.pattern.permute.xlu0 0
        %537 = vperm.xlu0 %536, %v440
        %v538 = vpop.permute.xlu0 %537
        %vm539 = vcmp.eq.s32.totalorder %v445, %v442
        %vm540 = vcmp.eq.s32.totalorder %v448, %v442
        %vm541 = vcmp.eq.s32.totalorder %v451, %v442
        %vm542 = vcmp.eq.s32.totalorder %v454, %v442
        %vm543 = vcmp.eq.s32.totalorder %v457, %v442
        %vm544 = vcmp.eq.s32.totalorder %v460, %v442
        %vm545 = vcmp.eq.s32.totalorder %v463, %v442
        %vm546 = vcmp.eq.s32.totalorder %v466, %v442
        %vm547 = vcmp.eq.s32.totalorder %v469, %v442
        %vm548 = vcmp.eq.s32.totalorder %v472, %v442
        %vm549 = vcmp.eq.s32.totalorder %v475, %v442
        %vm550 = vcmp.eq.s32.totalorder %v478, %v442
        %vm551 = vcmp.eq.s32.totalorder %v481, %v442
        %vm552 = vcmp.eq.s32.totalorder %v484, %v442
        %vm553 = vcmp.eq.s32.totalorder %v487, %v442
        %vm554 = vcmp.eq.s32.totalorder %v490, %v442
        %vm555 = vcmp.eq.s32.totalorder %v493, %v442
        %vm556 = vcmp.eq.s32.totalorder %v496, %v442
        %vm557 = vcmp.eq.s32.totalorder %v499, %v442
        %vm558 = vcmp.eq.s32.totalorder %v502, %v442
        %vm559 = vcmp.eq.s32.totalorder %v505, %v442
        %vm560 = vcmp.eq.s32.totalorder %v508, %v442
        %vm561 = vcmp.eq.s32.totalorder %v511, %v442
        %vm562 = vcmp.eq.s32.totalorder %v514, %v442
        %vm563 = vcmp.eq.s32.totalorder %v517, %v442
        %vm564 = vcmp.eq.s32.totalorder %v520, %v442
        %vm565 = vcmp.eq.s32.totalorder %v523, %v442
        %vm566 = vcmp.eq.s32.totalorder %v526, %v442
        %vm567 = vcmp.eq.s32.totalorder %v529, %v442
        %vm568 = vcmp.eq.s32.totalorder %v532, %v442
        %vm569 = vcmp.eq.s32.totalorder %v535, %v442
        %vm570 = vcmp.eq.s32.totalorder %v538, %v442
        %v571 = vsel %vm539, 1, 0
        %v572 = vsel %vm540, 1, 0
        %v573 = vsel %vm541, 1, 0
        %v574 = vsel %vm542, 1, 0
        %v575 = vsel %vm543, 1, 0
        %v576 = vsel %vm544, 1, 0
        %v577 = vsel %vm545, 1, 0
        %v578 = vsel %vm546, 1, 0
        %v579 = vsel %vm547, 1, 0
        %v580 = vsel %vm548, 1, 0
        %v581 = vsel %vm549, 1, 0
        %v582 = vsel %vm550, 1, 0
        %v583 = vsel %vm551, 1, 0
        %v584 = vsel %vm552, 1, 0
        %v585 = vsel %vm553, 1, 0
        %v586 = vsel %vm554, 1, 0
        %v587 = vsel %vm555, 1, 0
        %v588 = vsel %vm556, 1, 0
        %v589 = vsel %vm557, 1, 0
        %v590 = vsel %vm558, 1, 0
        %v591 = vsel %vm559, 1, 0
        %v592 = vsel %vm560, 1, 0
        %v593 = vsel %vm561, 1, 0
        %v594 = vsel %vm562, 1, 0
        %v595 = vsel %vm563, 1, 0
        %v596 = vsel %vm564, 1, 0
        %v597 = vsel %vm565, 1, 0
        %v598 = vsel %vm566, 1, 0
        %v599 = vsel %vm567, 1, 0
        %v600 = vsel %vm568, 1, 0
        %v601 = vsel %vm569, 1, 0
        %v602 = vsel %vm570, 1, 0
        %v603 = vcvt.s32.f32 %v571
        %v604 = vcvt.s32.f32 %v572
        %v605 = vcvt.s32.f32 %v573
        %v606 = vcvt.s32.f32 %v574
        %v607 = vcvt.s32.f32 %v575
        %v608 = vcvt.s32.f32 %v576
        %v609 = vcvt.s32.f32 %v577
        %v610 = vcvt.s32.f32 %v578
        %v611 = vcvt.s32.f32 %v579
        %v612 = vcvt.s32.f32 %v580
        %v613 = vcvt.s32.f32 %v581
        %v614 = vcvt.s32.f32 %v582
        %v615 = vcvt.s32.f32 %v583
        %v616 = vcvt.s32.f32 %v584
        %v617 = vcvt.s32.f32 %v585
        %v618 = vcvt.s32.f32 %v586
        %v619 = vcvt.s32.f32 %v587
        %v620 = vcvt.s32.f32 %v588
        %v621 = vcvt.s32.f32 %v589
        %v622 = vcvt.s32.f32 %v590
        %v623 = vcvt.s32.f32 %v591
        %v624 = vcvt.s32.f32 %v592
        %v625 = vcvt.s32.f32 %v593
        %v626 = vcvt.s32.f32 %v594
        %v627 = vcvt.s32.f32 %v595
        %v628 = vcvt.s32.f32 %v596
        %v629 = vcvt.s32.f32 %v597
        %v630 = vcvt.s32.f32 %v598
        %v631 = vcvt.s32.f32 %v599
        %v632 = vcvt.s32.f32 %v600
        %v633 = vcvt.s32.f32 %v601
        %v634 = vcvt.s32.f32 %v602
        %v635 = vld [vmem:[#allocation2] sm:$0xff]
        %v636 = vld [vmem:[#allocation2 + $0x8] sm:$0xff]
        %v637 = vadd.f32 %v603, %v604
        %v638 = vrot.slane %v637, 4
        %v639 = vadd.f32 %v637, %v638
        %v640 = vrot.slane %v639, 2
        %v641 = vadd.f32 %v639, %v640
        %v642 = vrot.slane %v641, 1
        %v643 = vadd.f32 %v641, %v642
        %v644 = vadd.f32 %v605, %v606
        %v645 = vrot.slane %v644, 4
        %v646 = vadd.f32 %v644, %v645
        %v647 = vrot.slane %v646, 2
        %v648 = vadd.f32 %v646, %v647
        %v649 = vrot.slane %v648, 1
        %v650 = vadd.f32 %v648, %v649
        %v651 = vadd.f32 %v607, %v608
        %v652 = vrot.slane %v651, 4
        %v653 = vadd.f32 %v651, %v652
        %v654 = vrot.slane %v653, 2
        %v655 = vadd.f32 %v653, %v654
        %v656 = vrot.slane %v655, 1
        %v657 = vadd.f32 %v655, %v656
        %v658 = vadd.f32 %v609, %v610
        %v659 = vrot.slane %v658, 4
        %v660 = vadd.f32 %v658, %v659
        %v661 = vrot.slane %v660, 2
        %v662 = vadd.f32 %v660, %v661
        %v663 = vrot.slane %v662, 1
        %v664 = vadd.f32 %v662, %v663
        %v665 = vadd.f32 %v611, %v612
        %v666 = vrot.slane %v665, 4
        %v667 = vadd.f32 %v665, %v666
        %v668 = vrot.slane %v667, 2
        %v669 = vadd.f32 %v667, %v668
        %v670 = vrot.slane %v669, 1
        %v671 = vadd.f32 %v669, %v670
        %v672 = vadd.f32 %v613, %v614
        %v673 = vrot.slane %v672, 4
        %v674 = vadd.f32 %v672, %v673
        %v675 = vrot.slane %v674, 2
        %v676 = vadd.f32 %v674, %v675
        %v677 = vrot.slane %v676, 1
        %v678 = vadd.f32 %v676, %v677
        %v679 = vadd.f32 %v615, %v616
        %v680 = vrot.slane %v679, 4
        %v681 = vadd.f32 %v679, %v680
        %v682 = vrot.slane %v681, 2
        %v683 = vadd.f32 %v681, %v682
        %v684 = vrot.slane %v683, 1
        %v685 = vadd.f32 %v683, %v684
        %v686 = vadd.f32 %v617, %v618
        %v687 = vrot.slane %v686, 4
        %v688 = vadd.f32 %v686, %v687
        %v689 = vrot.slane %v688, 2
        %v690 = vadd.f32 %v688, %v689
        %v691 = vrot.slane %v690, 1
        %v692 = vadd.f32 %v690, %v691
        %v693 = vadd.f32 %v619, %v620
        %v694 = vrot.slane %v693, 4
        %v695 = vadd.f32 %v693, %v694
        %v696 = vrot.slane %v695, 2
        %v697 = vadd.f32 %v695, %v696
        %v698 = vrot.slane %v697, 1
        %v699 = vadd.f32 %v697, %v698
        %v700 = vadd.f32 %v621, %v622
        %v701 = vrot.slane %v700, 4
        %v702 = vadd.f32 %v700, %v701
        %v703 = vrot.slane %v702, 2
        %v704 = vadd.f32 %v702, %v703
        %v705 = vrot.slane %v704, 1
        %v706 = vadd.f32 %v704, %v705
        %v707 = vadd.f32 %v623, %v624
        %v708 = vrot.slane %v707, 4
        %v709 = vadd.f32 %v707, %v708
        %v710 = vrot.slane %v709, 2
        %v711 = vadd.f32 %v709, %v710
        %v712 = vrot.slane %v711, 1
        %v713 = vadd.f32 %v711, %v712
        %v714 = vadd.f32 %v625, %v626
        %v715 = vrot.slane %v714, 4
        %v716 = vadd.f32 %v714, %v715
        %v717 = vrot.slane %v716, 2
        %v718 = vadd.f32 %v716, %v717
        %v719 = vrot.slane %v718, 1
        %v720 = vadd.f32 %v718, %v719
        %v721 = vadd.f32 %v627, %v628
        %v722 = vrot.slane %v721, 4
        %v723 = vadd.f32 %v721, %v722
        %v724 = vrot.slane %v723, 2
        %v725 = vadd.f32 %v723, %v724
        %v726 = vrot.slane %v725, 1
        %v727 = vadd.f32 %v725, %v726
        %v728 = vadd.f32 %v629, %v630
        %v729 = vrot.slane %v728, 4
        %v730 = vadd.f32 %v728, %v729
        %v731 = vrot.slane %v730, 2
        %v732 = vadd.f32 %v730, %v731
        %v733 = vrot.slane %v732, 1
        %v734 = vadd.f32 %v732, %v733
        %v735 = vadd.f32 %v631, %v632
        %v736 = vrot.slane %v735, 4
        %v737 = vadd.f32 %v735, %v736
        %v738 = vrot.slane %v737, 2
        %v739 = vadd.f32 %v737, %v738
        %v740 = vrot.slane %v739, 1
        %v741 = vadd.f32 %v739, %v740
        %v742 = vadd.f32 %v633, %v634
        %v743 = vrot.slane %v742, 4
        %v744 = vadd.f32 %v742, %v743
        %v745 = vrot.slane %v744, 2
        %v746 = vadd.f32 %v744, %v745
        %v747 = vrot.slane %v746, 1
        %v748 = vadd.f32 %v746, %v747
        %vm765 = vcmask 1041409
        %v766 = vsel %vm765, %v650, %v643
        %vm767 = vcmask 1042434
        %v768 = vsel %vm767, %v657, %v766
        %vm769 = vcmask 1043459
        %v770 = vsel %vm769, %v664, %v768
        %vm771 = vcmask 1044484
        %v772 = vsel %vm771, %v671, %v770
        %vm773 = vcmask 1045509
        %v774 = vsel %vm773, %v678, %v772
        %vm775 = vcmask 1046534
        %v776 = vsel %vm775, %v685, %v774
        %vm777 = vcmask 1047559
        %v778 = vsel %vm777, %v692, %v776
        %v779 = vsel %vm765, %v706, %v699
        %v780 = vsel %vm767, %v713, %v779
        %v781 = vsel %vm769, %v720, %v780
        %v782 = vsel %vm771, %v727, %v781
        %v783 = vsel %vm773, %v734, %v782
        %v784 = vsel %vm775, %v741, %v783
        %v785 = vsel %vm777, %v748, %v784
        %v788 = vadd.f32 %v635, %v778
        %v789 = vadd.f32 %v636, %v785
        %790 = vst [vmem:[#allocation2] sm:$0xff] %v788
        %791 = vst [vmem:[#allocation2 + $0x8] sm:$0xff] %v789
        %p792 = scmp.eq.s32.totalorder %s24, 1
        // Predicated region
        $region83: #{tpu_custom_call.1} parent=73 // pred_check
          %p793 = pneg %p792
        $region84: #{tpu_custom_call.1} parent=73 // pred_check_branch
          %795 = sbr.rel (%p793) target = $region86
        $region85: #{tpu_custom_call.1} parent=73 // pred_region
          %v796 = vld [vmem:[#allocation2] sm:$0xff]
          %v797 = vld [vmem:[#allocation2 + $0x8] sm:$0xff]
          %v798 = vld [vmem:[%s1] sm:$0xff]
          %v799 = vld [vmem:[%s1 + $0x8] sm:$0xff]
          %v800 = vld [vmem:[%s1 + $0x10] sm:$0xff]
          %v801 = vld [vmem:[%s1 + $0x18] sm:$0xff]
          %v802 = vld [vmem:[%s1 + $0x20] sm:$0xff]
          %v803 = vld [vmem:[%s1 + $0x28] sm:$0xff]
          %v804 = vld [vmem:[%s1 + $0x30] sm:$0xff]
          %v805 = vld [vmem:[%s1 + $0x38] sm:$0xff]
          %v806 = vld [vmem:[%s1 + $0x40] sm:$0xff]
          %v807 = vld [vmem:[%s1 + $0x48] sm:$0xff]
          %v808 = vld [vmem:[%s1 + $0x50] sm:$0xff]
          %v809 = vld [vmem:[%s1 + $0x58] sm:$0xff]
          %v810 = vld [vmem:[%s1 + $0x60] sm:$0xff]
          %v811 = vld [vmem:[%s1 + $0x68] sm:$0xff]
          %v812 = vld [vmem:[%s1 + $0x70] sm:$0xff]
          %v813 = vld [vmem:[%s1 + $0x78] sm:$0xff]
          %v814 = vld [vmem:[%s2] sm:$0x1]
          %v816 = vperm.slane %v814, 0
          %818 = vmatpush.msra.mxu0 %v813
          %819 = vmatpush.msra.mxu0 %v812
          %820 = vmatpush.msra.mxu0 %v811
          %821 = vmatpush.msra.mxu0 %v810
          %822 = vmatpush.msra.mxu0 %v809
          %823 = vmatpush.msra.mxu0 %v808
          %824 = vmatpush.msra.mxu0 %v807
          %825 = vmatpush.msra.mxu0 %v806
          %826 = vmatpush.msra.mxu0 %v805
          %827 = vmatpush.msra.mxu0 %v804
          %828 = vmatpush.msra.mxu0 %v803
          %829 = vmatpush.msra.mxu0 %v802
          %830 = vmatpush.msra.mxu0 %v801
          %831 = vmatpush.msra.mxu0 %v800
          %832 = vmatpush.msra.mxu0 %v799
          %833 = vmatpush.msra.mxu0 %v798
          %834 = vmatmul.f32.gmra.mxu0 %v796
          %v835 = vpop.f32.mrf.mxu0
          %v836 = vadd.f32 %v816, %v835
          %837 = vmatmul.f32.gmra.mxu0 %v797
          %v838 = vpop.f32.mrf.mxu0
          %v839 = vadd.f32 %v816, %v838
          %840 = vdwg.mxu0
          %v841 = vmax.f32 %v836, 0.0
          %v842 = vmax.f32 %v839, 0.0
          %v843 = vld [vmem:[%s3] sm:$0xff]
          %v844 = vld [vmem:[%s3 + $0x8] sm:$0xff]
          %v845 = vld [vmem:[%s3 + $0x10] sm:$0xff]
          %v846 = vld [vmem:[%s3 + $0x18] sm:$0xff]
          %v847 = vld [vmem:[%s3 + $0x20] sm:$0xff]
          %v848 = vld [vmem:[%s3 + $0x28] sm:$0xff]
          %v849 = vld [vmem:[%s3 + $0x30] sm:$0xff]
          %v850 = vld [vmem:[%s3 + $0x38] sm:$0xff]
          %v851 = vld [vmem:[%s3 + $0x40] sm:$0xff]
          %v852 = vld [vmem:[%s3 + $0x48] sm:$0xff]
          %v853 = vld [vmem:[%s3 + $0x50] sm:$0xff]
          %v854 = vld [vmem:[%s3 + $0x58] sm:$0xff]
          %v855 = vld [vmem:[%s3 + $0x60] sm:$0xff]
          %v856 = vld [vmem:[%s3 + $0x68] sm:$0xff]
          %v857 = vld [vmem:[%s3 + $0x70] sm:$0xff]
          %v858 = vld [vmem:[%s3 + $0x78] sm:$0xff]
          %v859 = vld [vmem:[%s4] sm:$0x1]
          %v861 = vperm.slane %v859, 0
          %863 = vmatpush.msra.mxu0 %v858
          %864 = vmatpush.msra.mxu0 %v857
          %865 = vmatpush.msra.mxu0 %v856
          %866 = vmatpush.msra.mxu0 %v855
          %867 = vmatpush.msra.mxu0 %v854
          %868 = vmatpush.msra.mxu0 %v853
          %869 = vmatpush.msra.mxu0 %v852
          %870 = vmatpush.msra.mxu0 %v851
          %871 = vmatpush.msra.mxu0 %v850
          %872 = vmatpush.msra.mxu0 %v849
          %873 = vmatpush.msra.mxu0 %v848
          %874 = vmatpush.msra.mxu0 %v847
          %875 = vmatpush.msra.mxu0 %v846
          %876 = vmatpush.msra.mxu0 %v845
          %877 = vmatpush.msra.mxu0 %v844
          %878 = vmatpush.msra.mxu0 %v843
          %879 = vmatmul.f32.gmra.mxu0 %v841
          %v880 = vpop.f32.mrf.mxu0
          %v881 = vadd.f32 %v861, %v880
          %882 = vmatmul.f32.gmra.mxu0 %v842
          %v883 = vpop.f32.mrf.mxu0
          %v884 = vadd.f32 %v861, %v883
          %885 = vdwg.mxu0
          %886 = vst [vmem:[%s399] sm:$0xff] %v881
          %887 = vst [vmem:[%s399 + $0x8] sm:$0xff] %v884
        $region86: #{tpu_custom_call.1} parent=73 // pred_fallthru
          _
        %s888 = sand.u32 %s151, 1
        %s889 = scalar_lea.sflag [#allocation5], %s888
        %s890 = sand.u32 %s151, 1
        %s891 = smul.addr %s890, 16
        %s892 = scalar_lea.vmem [#allocation4], %s891
        // Predicated region
        $region87: #{tpu_custom_call.1} parent=73 // pred_check
          %p893 = pneg %p161
        $region88: #{tpu_custom_call.1} parent=73 // pred_check_branch
          %895 = sbr.rel (%p893) target = $region90
        $region89: #{tpu_custom_call.1} parent=73 // pred_region
          %s896 = smul.u32 2, %s23
          %898 = vsyncadd %s889, 0
          %s899 = smul.addr %s896, 8
          %s900 = scalar_lea.hbm %s5, %s899
          %s901 = sshll.u32 %s892, 4
          %s902 = int_to_ptr.vmem [resolvable:$true] %s901
          %s903 = sshll.u32 %s900, 4
          %s904 = int_to_ptr.hbm [resolvable:$true] %s903
          %909 = dma.vmem_to_hbm [thread:$0]  %s902, 256, %s904, %s889, 128, 128, 8
        $region90: #{tpu_custom_call.1} parent=73 // pred_fallthru
          _
      $region74: #{tpu_custom_call.1} parent=5 // pred_fallthru
        _
      %p910 = scmp.le.s32.totalorder 2, %s14
      // Predicated region
      $region91: #{tpu_custom_call.1} parent=5 // pred_check
        %p911 = pneg %p910
      $region92: #{tpu_custom_call.1} parent=5 // pred_check_branch
        %913 = sbr.rel (%p911) target = $region94
      $region93: #{tpu_custom_call.1} parent=5 // pred_region
        %s914 = ssub.s32 %s14, 2
        // Predicated region
        $region95: #{tpu_custom_call.1} parent=93 // pred_check
          %p915 = pneg %p167
        $region96: #{tpu_custom_call.1} parent=93 // pred_check_branch
          %917 = sbr.rel (%p915) target = $region98
        $region97: #{tpu_custom_call.1} parent=93 // pred_region
          %s918 = sand.u32 %s152, 1
          %s919 = scalar_lea.sflag [#allocation5], %s918
          %s920 = sand.u32 %s152, 1
          %s921 = smul.addr %s920, 16
          %s922 = scalar_lea.vmem [#allocation4], %s921
          %924 = dma.done %s919, 256
        $region98: #{tpu_custom_call.1} parent=93 // pred_fallthru
          _
      $region94: #{tpu_custom_call.1} parent=5 // pred_fallthru
        _
    $region6: #{tpu_custom_call.1} parent=1 // loop_footer
      %s18 = sadd.s32 1, %s14
    $region7: #{tpu_custom_call.1} parent=1 // loop_footer_branch
      %13 = sbr.rel target = $region3
    $region8: #{tpu_custom_call.1} parent=1 // loop_exit
      _
    %925 = vsyncpa [#allocation5], 1
    %s926 = scalar_lea.sflag [#allocation5], 1
    %927 = vsyncpa %s926, 1

</llo_original>
